<compile_context>
chip_gen: v5e
topology: v5e:2x2
jax: 0.10.0
libtpu: 0.0.40
codegen_flags: <defaults>
</compile_context>

<pallas_src>
import functools

import jax
import jax.numpy as jnp
import numpy as np
from jax import lax
from jax.experimental import pallas as pl
from jax.experimental.pallas import tpu as pltpu


def _pixel_shuffle3d_kernel(s_ref, x_ref, o_ref, *, r, split_terms):
    # s_ref: (r^2, H*W, Hr*Wr)  bf16 0/1 scatter matrices (shared across rd)
    # x_ref: (1, 1, r^3, TD, H*W)  one (batch, channel-group, depth-tile) block
    # o_ref: (1, 1, TD, r*Hr*Wr)   lane-dense output block
    r2 = r * r
    td = x_ref.shape[3]
    hrwr = s_ref.shape[2]

    for rd in range(r):  # tiny static loop; the store ends each live range

        def body(j, acc, rd=rd):
            p = x_ref[0, 0, rd * r2 + j]          # (TD, H*W)
            if split_terms == 1:
                # bf16 input: single native MXU pass, exact for a 0/1 scatter.
                return acc + jnp.dot(p, s_ref[j],
                                     preferred_element_type=jnp.float32)
            # f32 input: exact multi-term bf16 split (hi/mid/lo), each term a
            # single DEFAULT-precision pass; the f32 re-sum is exact because
            # every output element receives exactly one nonzero product per term.
            resid = p
            for _ in range(split_terms):
                part = resid.astype(jnp.bfloat16)
                acc = acc + jnp.dot(part, s_ref[j],
                                    preferred_element_type=jnp.float32)
                resid = resid - part.astype(jnp.float32)
            return acc

        acc = lax.fori_loop(0, r2, body,
                            jnp.zeros((td, hrwr), jnp.float32), unroll=True)
        # Contiguous, 128-aligned slice of the flat output (Hr*Wr multiple of 128
        # in the targeted small-plane regime -> unmasked lane-dense stores).
        o_ref[0, 0, :, pl.ds(rd * hrwr, hrwr)] = acc.astype(o_ref.dtype)


def _vmem_budget():
    """Per-generation VMEM budgeting (v7x has 64 MiB physical, v5e/v6e 128 MiB)."""
    try:
        cap = int(getattr(pltpu.get_tpu_info(), "vmem_capacity_bytes", 64 << 20))
    except Exception:
        cap = 64 << 20  # conservative: assume the smallest (v7x-class) part
    if cap >= (100 << 20):   # v5e / v6e
        return {"vmem_limit": 64 << 20, "target_block": 2 << 20, "s_cap": 4 << 20}
    return {"vmem_limit": 32 << 20, "target_block": 1 << 20, "s_cap": 2 << 20}


def _pick_td(D, per_d_bytes, target_bytes):
    # TD is the second-minor dim of the input/output blocks: it must be a
    # multiple of 8 or the full extent D, and a divisor of D.
    cands = [t for t in range(D, 0, -1)
             if D % t == 0 and (t == D or t % 8 == 0)]
    for t in cands:                       # largest legal divisor within budget
        if t * per_d_bytes <= target_bytes:
            return t
    return cands[-1]                      # smallest legal divisor as fallback


def _build_scatter(r, H, W):
    """S[j, h*W+w, (h*r+rh)*Wr + (w*r+rw)] = 1, with j = rh*r + rw."""
    Hr, Wr = H * r, W * r
    r2 = r * r
    j = np.arange(r2)
    rh, rw = j // r, j % r
    h = np.arange(H)
    w = np.arange(W)
    col = ((h[None, :, None] * r + rh[:, None, None]) * Wr
           + (w[None, None, :] * r + rw[:, None, None]))      # (r^2, H, W)
    col = col.reshape(r2, H * W)
    return col[:, :, None] == np.arange(Hr * Wr)[None, None, :]   # bool 0/1


def pixel_shuffle_3d(x, scale_factor):
    B, Cin, D, H, W = x.shape
    r = int(scale_factor)
    r3 = r ** 3
    if Cin % r3 != 0:
        raise ValueError("channels must be divisible by scale_factor**3")
    if jnp.dtype(x.dtype) not in (jnp.dtype(jnp.float32), jnp.dtype(jnp.bfloat16)):
        # TODO(synk): integer/fp8 inputs need a copy-based (non-MXU) scatter path.
        raise NotImplementedError("pixel_shuffle_3d kernel supports f32/bf16 only")

    C = Cin // r3
    HW = H * W
    Hr, Wr = H * r, W * r
    HrWr = Hr * Wr
    N = r * HrWr

    budget = _vmem_budget()
    scatter_bytes = (r * r) * HW * HrWr * 2     # S is bf16
    if scatter_bytes > budget["s_cap"]:
        # TODO(synk): separable W-only scatter + sublane-strided stores here.
        raise NotImplementedError(
            f"spatial plane too large for the fused-scatter path "
            f"({scatter_bytes} B > {budget['s_cap']} B)")

    itemsize = jnp.dtype(x.dtype).itemsize
    per_d_bytes = r3 * HW * (2 * itemsize)      # input + output bytes per depth row
    TD = _pick_td(D, per_d_bytes, budget["target_block"])
    # Keep at least 2 grid points so both v7x TensorCores get work when B*C == 1.
    if B * C == 1 and TD == D:
        smaller = [t for t in range(D - 1, 0, -1) if D % t == 0 and t % 8 == 0]
        if smaller:
            TD = smaller[0]

    # Constant 0/1 scatter matrices, always bf16 (exact).
    S = jnp.asarray(_build_scatter(r, H, W), dtype=jnp.bfloat16)

    # Free contiguous reshape: split channels into (C, r^3), merge (H, W).
    x_v = x.reshape(B, C, r3, D, HW)

    split_terms = 3 if jnp.dtype(x.dtype) == jnp.float32 else 1
    kernel = functools.partial(_pixel_shuffle3d_kernel, r=r,
                               split_terms=split_terms)

    out_flat = pl.pallas_call(
        kernel,
        out_shape=jax.ShapeDtypeStruct((B, C, D, N), x.dtype),
        grid_spec=pltpu.PrefetchScalarGridSpec(
            num_scalar_prefetch=0,
            grid=(B, C, D // TD),
            in_specs=[
                pl.BlockSpec((r * r, HW, HrWr), lambda b, c, d: (0, 0, 0)),
                pl.BlockSpec((1, 1, r3, TD, HW), lambda b, c, d: (b, c, 0, d, 0)),
            ],
            out_specs=pl.BlockSpec((1, 1, TD, N), lambda b, c, d: (b, c, d, 0)),
        ),
        compiler_params=pltpu.CompilerParams(
            dimension_semantics=("parallel", "parallel", "parallel"),
            vmem_limit_bytes=budget["vmem_limit"]),
    )(S, x_v)

    # Free contiguous reshape back to NCDHW output layout.
    return out_flat.reshape(B, C, D * r, Hr, Wr)


def _reference_pixel_shuffle_3d(x, r):
    # Direct JAX transcription of the PyTorch forward (for verification).
    B, Cin, D, H, W = x.shape
    C = Cin // (r ** 3)
    y = x.reshape(B, C, r, r, r, D, H, W)
    y = jnp.transpose(y, (0, 1, 5, 2, 6, 3, 7, 4))
    return y.reshape(B, C, D * r, H * r, W * r)


if __name__ == "__main__":
    key = jax.random.PRNGKey(0)
    r = 2
    B, C, D, H, W = 2, 4, 4, 8, 8          # input channels = C * r^3 = 32
    x = jax.random.normal(key, (B, C * r ** 3, D, H, W), dtype=jnp.float32)

    # float32 path (exact 3-term bf16 split)
    out = jax.block_until_ready(pixel_shuffle_3d(x, r))
    ref = _reference_pixel_shuffle_3d(x, r)
    assert out.shape == (B, C, D * r, H * r, W * r), out.shape
    assert out.dtype == x.dtype
    assert jnp.allclose(out, ref, rtol=0.0, atol=1e-6), "f32 mismatch vs reference"

    # bfloat16 path (single native pass, bit-exact permutation)
    xb = x.astype(jnp.bfloat16)
    out_b = jax.block_until_ready(pixel_shuffle_3d(xb, r))
    ref_b = _reference_pixel_shuffle_3d(xb, r)
    assert out_b.dtype == jnp.bfloat16
    assert jnp.array_equal(out_b, ref_b), "bf16 mismatch vs reference"

    print("KERNEL_OK")
</pallas_src>

<mosaic_0001>
module attributes {stable_mosaic.version = 11 : i64} {
  func.func @_pixel_shuffle3d_kernel(%arg0: i32, %arg1: i32, %arg2: i32, %arg3: memref<4x64x256xbf16, #tpu.memory_space<vmem>>, %arg4: memref<1x1x8x4x64xf32, #tpu.memory_space<vmem>>, %arg5: memref<1x1x4x512xf32, #tpu.memory_space<vmem>>) attributes {dimension_semantics = [#tpu.dimension_semantics<parallel>, #tpu.dimension_semantics<parallel>, #tpu.dimension_semantics<parallel>], iteration_bounds = array<i64: 2, 4, 1>, scalar_prefetch = 0 : i64, scratch_operands = 0 : i64, tpu.core_type = #tpu.core_type<tc>, window_params = [{pipeline_mode = #tpu.pipeline_mode<synchronous>, transform_indices = @transform_0, window_bounds = array<i64: 4, 64, 256>}, {transform_indices = @transform_1, window_bounds = array<i64: 1, 1, 8, 4, 64>}, {transform_indices = @transform_2, window_bounds = array<i64: 1, 1, 4, 512>}]} {
    %cst = arith.constant 0.000000e+00 : f32
    %0 = vector.broadcast %cst : f32 to vector<4x256xf32>
    %c0_i32 = arith.constant 0 : i32
    %c0_i32_0 = arith.constant 0 : i32
    %1 = arith.addi %c0_i32_0, %c0_i32 : i32
    %c0 = arith.constant 0 : index
    %c0_1 = arith.constant 0 : index
    %2 = arith.index_cast %1 : i32 to index
    %c0_2 = arith.constant 0 : index
    %c0_3 = arith.constant 0 : index
    %3 = vector.load %arg4[%c0, %c0_1, %2, %c0_2, %c0_3] : memref<1x1x8x4x64xf32, #tpu.memory_space<vmem>>, vector<1x1x1x4x64xf32>
    %4 = vector.shape_cast %3 : vector<1x1x1x4x64xf32> to vector<4x64xf32>
    %5 = arith.truncf %4 : vector<4x64xf32> to vector<4x64xbf16>
    %6 = arith.index_cast %c0_i32 : i32 to index
    %c0_4 = arith.constant 0 : index
    %c0_5 = arith.constant 0 : index
    %7 = vector.load %arg3[%6, %c0_4, %c0_5] : memref<4x64x256xbf16, #tpu.memory_space<vmem>>, vector<1x64x256xbf16>
    %8 = vector.shape_cast %7 : vector<1x64x256xbf16> to vector<64x256xbf16>
    %cst_6 = arith.constant dense<0.000000e+00> : vector<4x256xf32>
    %9 = tpu.matmul %5, %8, %cst_6 {dimension_numbers = #tpu.dot_dimension_numbers<[1], [0], [0], [1], [0, 0, 1, 1], [], []>} : vector<4x64xbf16>, vector<64x256xbf16>, vector<4x256xf32> -> vector<4x256xf32>
    %10 = arith.addf %0, %9 : vector<4x256xf32>
    %11 = arith.extf %5 : vector<4x64xbf16> to vector<4x64xf32>
    %12 = arith.subf %4, %11 : vector<4x64xf32>
    %13 = arith.truncf %12 : vector<4x64xf32> to vector<4x64xbf16>
    %14 = arith.index_cast %c0_i32 : i32 to index
    %c0_7 = arith.constant 0 : index
    %c0_8 = arith.constant 0 : index
    %15 = vector.load %arg3[%14, %c0_7, %c0_8] : memref<4x64x256xbf16, #tpu.memory_space<vmem>>, vector<1x64x256xbf16>
    %16 = vector.shape_cast %15 : vector<1x64x256xbf16> to vector<64x256xbf16>
    %cst_9 = arith.constant dense<0.000000e+00> : vector<4x256xf32>
    %17 = tpu.matmul %13, %16, %cst_9 {dimension_numbers = #tpu.dot_dimension_numbers<[1], [0], [0], [1], [0, 0, 1, 1], [], []>} : vector<4x64xbf16>, vector<64x256xbf16>, vector<4x256xf32> -> vector<4x256xf32>
    %18 = arith.addf %10, %17 : vector<4x256xf32>
    %19 = arith.extf %13 : vector<4x64xbf16> to vector<4x64xf32>
    %20 = arith.subf %12, %19 : vector<4x64xf32>
    %21 = arith.truncf %20 : vector<4x64xf32> to vector<4x64xbf16>
    %22 = arith.index_cast %c0_i32 : i32 to index
    %c0_10 = arith.constant 0 : index
    %c0_11 = arith.constant 0 : index
    %23 = vector.load %arg3[%22, %c0_10, %c0_11] : memref<4x64x256xbf16, #tpu.memory_space<vmem>>, vector<1x64x256xbf16>
    %24 = vector.shape_cast %23 : vector<1x64x256xbf16> to vector<64x256xbf16>
    %cst_12 = arith.constant dense<0.000000e+00> : vector<4x256xf32>
    %25 = tpu.matmul %21, %24, %cst_12 {dimension_numbers = #tpu.dot_dimension_numbers<[1], [0], [0], [1], [0, 0, 1, 1], [], []>} : vector<4x64xbf16>, vector<64x256xbf16>, vector<4x256xf32> -> vector<4x256xf32>
    %26 = arith.addf %18, %25 : vector<4x256xf32>
    %c1_i32 = arith.constant 1 : i32
    %c0_i32_13 = arith.constant 0 : i32
    %27 = arith.addi %c0_i32_13, %c1_i32 : i32
    %c0_14 = arith.constant 0 : index
    %c0_15 = arith.constant 0 : index
    %28 = arith.index_cast %27 : i32 to index
    %c0_16 = arith.constant 0 : index
    %c0_17 = arith.constant 0 : index
    %29 = vector.load %arg4[%c0_14, %c0_15, %28, %c0_16, %c0_17] : memref<1x1x8x4x64xf32, #tpu.memory_space<vmem>>, vector<1x1x1x4x64xf32>
    %30 = vector.shape_cast %29 : vector<1x1x1x4x64xf32> to vector<4x64xf32>
    %31 = arith.truncf %30 : vector<4x64xf32> to vector<4x64xbf16>
    %32 = arith.index_cast %c1_i32 : i32 to index
    %c0_18 = arith.constant 0 : index
    %c0_19 = arith.constant 0 : index
    %33 = vector.load %arg3[%32, %c0_18, %c0_19] : memref<4x64x256xbf16, #tpu.memory_space<vmem>>, vector<1x64x256xbf16>
    %34 = vector.shape_cast %33 : vector<1x64x256xbf16> to vector<64x256xbf16>
    %cst_20 = arith.constant dense<0.000000e+00> : vector<4x256xf32>
    %35 = tpu.matmul %31, %34, %cst_20 {dimension_numbers = #tpu.dot_dimension_numbers<[1], [0], [0], [1], [0, 0, 1, 1], [], []>} : vector<4x64xbf16>, vector<64x256xbf16>, vector<4x256xf32> -> vector<4x256xf32>
    %36 = arith.addf %26, %35 : vector<4x256xf32>
    %37 = arith.extf %31 : vector<4x64xbf16> to vector<4x64xf32>
    %38 = arith.subf %30, %37 : vector<4x64xf32>
    %39 = arith.truncf %38 : vector<4x64xf32> to vector<4x64xbf16>
    %40 = arith.index_cast %c1_i32 : i32 to index
    %c0_21 = arith.constant 0 : index
    %c0_22 = arith.constant 0 : index
    %41 = vector.load %arg3[%40, %c0_21, %c0_22] : memref<4x64x256xbf16, #tpu.memory_space<vmem>>, vector<1x64x256xbf16>
    %42 = vector.shape_cast %41 : vector<1x64x256xbf16> to vector<64x256xbf16>
    %cst_23 = arith.constant dense<0.000000e+00> : vector<4x256xf32>
    %43 = tpu.matmul %39, %42, %cst_23 {dimension_numbers = #tpu.dot_dimension_numbers<[1], [0], [0], [1], [0, 0, 1, 1], [], []>} : vector<4x64xbf16>, vector<64x256xbf16>, vector<4x256xf32> -> vector<4x256xf32>
    %44 = arith.addf %36, %43 : vector<4x256xf32>
    %45 = arith.extf %39 : vector<4x64xbf16> to vector<4x64xf32>
    %46 = arith.subf %38, %45 : vector<4x64xf32>
    %47 = arith.truncf %46 : vector<4x64xf32> to vector<4x64xbf16>
    %48 = arith.index_cast %c1_i32 : i32 to index
    %c0_24 = arith.constant 0 : index
    %c0_25 = arith.constant 0 : index
    %49 = vector.load %arg3[%48, %c0_24, %c0_25] : memref<4x64x256xbf16, #tpu.memory_space<vmem>>, vector<1x64x256xbf16>
    %50 = vector.shape_cast %49 : vector<1x64x256xbf16> to vector<64x256xbf16>
    %cst_26 = arith.constant dense<0.000000e+00> : vector<4x256xf32>
    %51 = tpu.matmul %47, %50, %cst_26 {dimension_numbers = #tpu.dot_dimension_numbers<[1], [0], [0], [1], [0, 0, 1, 1], [], []>} : vector<4x64xbf16>, vector<64x256xbf16>, vector<4x256xf32> -> vector<4x256xf32>
    %52 = arith.addf %44, %51 : vector<4x256xf32>
    %c2_i32 = arith.constant 2 : i32
    %c0_i32_27 = arith.constant 0 : i32
    %53 = arith.addi %c0_i32_27, %c2_i32 : i32
    %c0_28 = arith.constant 0 : index
    %c0_29 = arith.constant 0 : index
    %54 = arith.index_cast %53 : i32 to index
    %c0_30 = arith.constant 0 : index
    %c0_31 = arith.constant 0 : index
    %55 = vector.load %arg4[%c0_28, %c0_29, %54, %c0_30, %c0_31] : memref<1x1x8x4x64xf32, #tpu.memory_space<vmem>>, vector<1x1x1x4x64xf32>
    %56 = vector.shape_cast %55 : vector<1x1x1x4x64xf32> to vector<4x64xf32>
    %57 = arith.truncf %56 : vector<4x64xf32> to vector<4x64xbf16>
    %58 = arith.index_cast %c2_i32 : i32 to index
    %c0_32 = arith.constant 0 : index
    %c0_33 = arith.constant 0 : index
    %59 = vector.load %arg3[%58, %c0_32, %c0_33] : memref<4x64x256xbf16, #tpu.memory_space<vmem>>, vector<1x64x256xbf16>
    %60 = vector.shape_cast %59 : vector<1x64x256xbf16> to vector<64x256xbf16>
    %cst_34 = arith.constant dense<0.000000e+00> : vector<4x256xf32>
    %61 = tpu.matmul %57, %60, %cst_34 {dimension_numbers = #tpu.dot_dimension_numbers<[1], [0], [0], [1], [0, 0, 1, 1], [], []>} : vector<4x64xbf16>, vector<64x256xbf16>, vector<4x256xf32> -> vector<4x256xf32>
    %62 = arith.addf %52, %61 : vector<4x256xf32>
    %63 = arith.extf %57 : vector<4x64xbf16> to vector<4x64xf32>
    %64 = arith.subf %56, %63 : vector<4x64xf32>
    %65 = arith.truncf %64 : vector<4x64xf32> to vector<4x64xbf16>
    %66 = arith.index_cast %c2_i32 : i32 to index
    %c0_35 = arith.constant 0 : index
    %c0_36 = arith.constant 0 : index
    %67 = vector.load %arg3[%66, %c0_35, %c0_36] : memref<4x64x256xbf16, #tpu.memory_space<vmem>>, vector<1x64x256xbf16>
    %68 = vector.shape_cast %67 : vector<1x64x256xbf16> to vector<64x256xbf16>
    %cst_37 = arith.constant dense<0.000000e+00> : vector<4x256xf32>
    %69 = tpu.matmul %65, %68, %cst_37 {dimension_numbers = #tpu.dot_dimension_numbers<[1], [0], [0], [1], [0, 0, 1, 1], [], []>} : vector<4x64xbf16>, vector<64x256xbf16>, vector<4x256xf32> -> vector<4x256xf32>
    %70 = arith.addf %62, %69 : vector<4x256xf32>
    %71 = arith.extf %65 : vector<4x64xbf16> to vector<4x64xf32>
    %72 = arith.subf %64, %71 : vector<4x64xf32>
    %73 = arith.truncf %72 : vector<4x64xf32> to vector<4x64xbf16>
    %74 = arith.index_cast %c2_i32 : i32 to index
    %c0_38 = arith.constant 0 : index
    %c0_39 = arith.constant 0 : index
    %75 = vector.load %arg3[%74, %c0_38, %c0_39] : memref<4x64x256xbf16, #tpu.memory_space<vmem>>, vector<1x64x256xbf16>
    %76 = vector.shape_cast %75 : vector<1x64x256xbf16> to vector<64x256xbf16>
    %cst_40 = arith.constant dense<0.000000e+00> : vector<4x256xf32>
    %77 = tpu.matmul %73, %76, %cst_40 {dimension_numbers = #tpu.dot_dimension_numbers<[1], [0], [0], [1], [0, 0, 1, 1], [], []>} : vector<4x64xbf16>, vector<64x256xbf16>, vector<4x256xf32> -> vector<4x256xf32>
    %78 = arith.addf %70, %77 : vector<4x256xf32>
    %c3_i32 = arith.constant 3 : i32
    %c0_i32_41 = arith.constant 0 : i32
    %79 = arith.addi %c0_i32_41, %c3_i32 : i32
    %c0_42 = arith.constant 0 : index
    %c0_43 = arith.constant 0 : index
    %80 = arith.index_cast %79 : i32 to index
    %c0_44 = arith.constant 0 : index
    %c0_45 = arith.constant 0 : index
    %81 = vector.load %arg4[%c0_42, %c0_43, %80, %c0_44, %c0_45] : memref<1x1x8x4x64xf32, #tpu.memory_space<vmem>>, vector<1x1x1x4x64xf32>
    %82 = vector.shape_cast %81 : vector<1x1x1x4x64xf32> to vector<4x64xf32>
    %83 = arith.truncf %82 : vector<4x64xf32> to vector<4x64xbf16>
    %84 = arith.index_cast %c3_i32 : i32 to index
    %c0_46 = arith.constant 0 : index
    %c0_47 = arith.constant 0 : index
    %85 = vector.load %arg3[%84, %c0_46, %c0_47] : memref<4x64x256xbf16, #tpu.memory_space<vmem>>, vector<1x64x256xbf16>
    %86 = vector.shape_cast %85 : vector<1x64x256xbf16> to vector<64x256xbf16>
    %cst_48 = arith.constant dense<0.000000e+00> : vector<4x256xf32>
    %87 = tpu.matmul %83, %86, %cst_48 {dimension_numbers = #tpu.dot_dimension_numbers<[1], [0], [0], [1], [0, 0, 1, 1], [], []>} : vector<4x64xbf16>, vector<64x256xbf16>, vector<4x256xf32> -> vector<4x256xf32>
    %88 = arith.addf %78, %87 : vector<4x256xf32>
    %89 = arith.extf %83 : vector<4x64xbf16> to vector<4x64xf32>
    %90 = arith.subf %82, %89 : vector<4x64xf32>
    %91 = arith.truncf %90 : vector<4x64xf32> to vector<4x64xbf16>
    %92 = arith.index_cast %c3_i32 : i32 to index
    %c0_49 = arith.constant 0 : index
    %c0_50 = arith.constant 0 : index
    %93 = vector.load %arg3[%92, %c0_49, %c0_50] : memref<4x64x256xbf16, #tpu.memory_space<vmem>>, vector<1x64x256xbf16>
    %94 = vector.shape_cast %93 : vector<1x64x256xbf16> to vector<64x256xbf16>
    %cst_51 = arith.constant dense<0.000000e+00> : vector<4x256xf32>
    %95 = tpu.matmul %91, %94, %cst_51 {dimension_numbers = #tpu.dot_dimension_numbers<[1], [0], [0], [1], [0, 0, 1, 1], [], []>} : vector<4x64xbf16>, vector<64x256xbf16>, vector<4x256xf32> -> vector<4x256xf32>
    %96 = arith.addf %88, %95 : vector<4x256xf32>
    %97 = arith.extf %91 : vector<4x64xbf16> to vector<4x64xf32>
    %98 = arith.subf %90, %97 : vector<4x64xf32>
    %99 = arith.truncf %98 : vector<4x64xf32> to vector<4x64xbf16>
    %100 = arith.index_cast %c3_i32 : i32 to index
    %c0_52 = arith.constant 0 : index
    %c0_53 = arith.constant 0 : index
    %101 = vector.load %arg3[%100, %c0_52, %c0_53] : memref<4x64x256xbf16, #tpu.memory_space<vmem>>, vector<1x64x256xbf16>
    %102 = vector.shape_cast %101 : vector<1x64x256xbf16> to vector<64x256xbf16>
    %cst_54 = arith.constant dense<0.000000e+00> : vector<4x256xf32>
    %103 = tpu.matmul %99, %102, %cst_54 {dimension_numbers = #tpu.dot_dimension_numbers<[1], [0], [0], [1], [0, 0, 1, 1], [], []>} : vector<4x64xbf16>, vector<64x256xbf16>, vector<4x256xf32> -> vector<4x256xf32>
    %104 = arith.addf %96, %103 : vector<4x256xf32>
    %c4_i32 = arith.constant 4 : i32
    %c0_55 = arith.constant 0 : index
    %c0_56 = arith.constant 0 : index
    %c0_57 = arith.constant 0 : index
    %c0_58 = arith.constant 0 : index
    %105 = vector.load %arg5[%c0_55, %c0_56, %c0_57, %c0_58] : memref<1x1x4x512xf32, #tpu.memory_space<vmem>>, vector<1x1x4x256xf32>
    %106 = vector.shape_cast %105 : vector<1x1x4x256xf32> to vector<4x256xf32>
    %107 = vector.shape_cast %104 : vector<4x256xf32> to vector<1x1x4x256xf32>
    tpu.vector_store %arg5[%c0_55, %c0_56, %c0_57, %c0_58], %107 {strides = array<i32>} : memref<1x1x4x512xf32, #tpu.memory_space<vmem>>, vector<1x1x4x256xf32>,
    %cst_59 = arith.constant 0.000000e+00 : f32
    %108 = vector.broadcast %cst_59 : f32 to vector<4x256xf32>
    %c0_i32_60 = arith.constant 0 : i32
    %c4_i32_61 = arith.constant 4 : i32
    %109 = arith.addi %c4_i32_61, %c0_i32_60 : i32
    %c0_62 = arith.constant 0 : index
    %c0_63 = arith.constant 0 : index
    %110 = arith.index_cast %109 : i32 to index
    %c0_64 = arith.constant 0 : index
    %c0_65 = arith.constant 0 : index
    %111 = vector.load %arg4[%c0_62, %c0_63, %110, %c0_64, %c0_65] : memref<1x1x8x4x64xf32, #tpu.memory_space<vmem>>, vector<1x1x1x4x64xf32>
    %112 = vector.shape_cast %111 : vector<1x1x1x4x64xf32> to vector<4x64xf32>
    %113 = arith.truncf %112 : vector<4x64xf32> to vector<4x64xbf16>
    %114 = arith.index_cast %c0_i32_60 : i32 to index
    %c0_66 = arith.constant 0 : index
    %c0_67 = arith.constant 0 : index
    %115 = vector.load %arg3[%114, %c0_66, %c0_67] : memref<4x64x256xbf16, #tpu.memory_space<vmem>>, vector<1x64x256xbf16>
    %116 = vector.shape_cast %115 : vector<1x64x256xbf16> to vector<64x256xbf16>
    %cst_68 = arith.constant dense<0.000000e+00> : vector<4x256xf32>
    %117 = tpu.matmul %113, %116, %cst_68 {dimension_numbers = #tpu.dot_dimension_numbers<[1], [0], [0], [1], [0, 0, 1, 1], [], []>} : vector<4x64xbf16>, vector<64x256xbf16>, vector<4x256xf32> -> vector<4x256xf32>
    %118 = arith.addf %108, %117 : vector<4x256xf32>
    %119 = arith.extf %113 : vector<4x64xbf16> to vector<4x64xf32>
    %120 = arith.subf %112, %119 : vector<4x64xf32>
    %121 = arith.truncf %120 : vector<4x64xf32> to vector<4x64xbf16>
    %122 = arith.index_cast %c0_i32_60 : i32 to index
    %c0_69 = arith.constant 0 : index
    %c0_70 = arith.constant 0 : index
    %123 = vector.load %arg3[%122, %c0_69, %c0_70] : memref<4x64x256xbf16, #tpu.memory_space<vmem>>, vector<1x64x256xbf16>
    %124 = vector.shape_cast %123 : vector<1x64x256xbf16> to vector<64x256xbf16>
    %cst_71 = arith.constant dense<0.000000e+00> : vector<4x256xf32>
    %125 = tpu.matmul %121, %124, %cst_71 {dimension_numbers = #tpu.dot_dimension_numbers<[1], [0], [0], [1], [0, 0, 1, 1], [], []>} : vector<4x64xbf16>, vector<64x256xbf16>, vector<4x256xf32> -> vector<4x256xf32>
    %126 = arith.addf %118, %125 : vector<4x256xf32>
    %127 = arith.extf %121 : vector<4x64xbf16> to vector<4x64xf32>
    %128 = arith.subf %120, %127 : vector<4x64xf32>
    %129 = arith.truncf %128 : vector<4x64xf32> to vector<4x64xbf16>
    %130 = arith.index_cast %c0_i32_60 : i32 to index
    %c0_72 = arith.constant 0 : index
    %c0_73 = arith.constant 0 : index
    %131 = vector.load %arg3[%130, %c0_72, %c0_73] : memref<4x64x256xbf16, #tpu.memory_space<vmem>>, vector<1x64x256xbf16>
    %132 = vector.shape_cast %131 : vector<1x64x256xbf16> to vector<64x256xbf16>
    %cst_74 = arith.constant dense<0.000000e+00> : vector<4x256xf32>
    %133 = tpu.matmul %129, %132, %cst_74 {dimension_numbers = #tpu.dot_dimension_numbers<[1], [0], [0], [1], [0, 0, 1, 1], [], []>} : vector<4x64xbf16>, vector<64x256xbf16>, vector<4x256xf32> -> vector<4x256xf32>
    %134 = arith.addf %126, %133 : vector<4x256xf32>
    %c1_i32_75 = arith.constant 1 : i32
    %c4_i32_76 = arith.constant 4 : i32
    %135 = arith.addi %c4_i32_76, %c1_i32_75 : i32
    %c0_77 = arith.constant 0 : index
    %c0_78 = arith.constant 0 : index
    %136 = arith.index_cast %135 : i32 to index
    %c0_79 = arith.constant 0 : index
    %c0_80 = arith.constant 0 : index
    %137 = vector.load %arg4[%c0_77, %c0_78, %136, %c0_79, %c0_80] : memref<1x1x8x4x64xf32, #tpu.memory_space<vmem>>, vector<1x1x1x4x64xf32>
    %138 = vector.shape_cast %137 : vector<1x1x1x4x64xf32> to vector<4x64xf32>
    %139 = arith.truncf %138 : vector<4x64xf32> to vector<4x64xbf16>
    %140 = arith.index_cast %c1_i32_75 : i32 to index
    %c0_81 = arith.constant 0 : index
    %c0_82 = arith.constant 0 : index
    %141 = vector.load %arg3[%140, %c0_81, %c0_82] : memref<4x64x256xbf16, #tpu.memory_space<vmem>>, vector<1x64x256xbf16>
    %142 = vector.shape_cast %141 : vector<1x64x256xbf16> to vector<64x256xbf16>
    %cst_83 = arith.constant dense<0.000000e+00> : vector<4x256xf32>
    %143 = tpu.matmul %139, %142, %cst_83 {dimension_numbers = #tpu.dot_dimension_numbers<[1], [0], [0], [1], [0, 0, 1, 1], [], []>} : vector<4x64xbf16>, vector<64x256xbf16>, vector<4x256xf32> -> vector<4x256xf32>
    %144 = arith.addf %134, %143 : vector<4x256xf32>
    %145 = arith.extf %139 : vector<4x64xbf16> to vector<4x64xf32>
    %146 = arith.subf %138, %145 : vector<4x64xf32>
    %147 = arith.truncf %146 : vector<4x64xf32> to vector<4x64xbf16>
    %148 = arith.index_cast %c1_i32_75 : i32 to index
    %c0_84 = arith.constant 0 : index
    %c0_85 = arith.constant 0 : index
    %149 = vector.load %arg3[%148, %c0_84, %c0_85] : memref<4x64x256xbf16, #tpu.memory_space<vmem>>, vector<1x64x256xbf16>
    %150 = vector.shape_cast %149 : vector<1x64x256xbf16> to vector<64x256xbf16>
    %cst_86 = arith.constant dense<0.000000e+00> : vector<4x256xf32>
    %151 = tpu.matmul %147, %150, %cst_86 {dimension_numbers = #tpu.dot_dimension_numbers<[1], [0], [0], [1], [0, 0, 1, 1], [], []>} : vector<4x64xbf16>, vector<64x256xbf16>, vector<4x256xf32> -> vector<4x256xf32>
    %152 = arith.addf %144, %151 : vector<4x256xf32>
    %153 = arith.extf %147 : vector<4x64xbf16> to vector<4x64xf32>
    %154 = arith.subf %146, %153 : vector<4x64xf32>
    %155 = arith.truncf %154 : vector<4x64xf32> to vector<4x64xbf16>
    %156 = arith.index_cast %c1_i32_75 : i32 to index
    %c0_87 = arith.constant 0 : index
    %c0_88 = arith.constant 0 : index
    %157 = vector.load %arg3[%156, %c0_87, %c0_88] : memref<4x64x256xbf16, #tpu.memory_space<vmem>>, vector<1x64x256xbf16>
    %158 = vector.shape_cast %157 : vector<1x64x256xbf16> to vector<64x256xbf16>
    %cst_89 = arith.constant dense<0.000000e+00> : vector<4x256xf32>
    %159 = tpu.matmul %155, %158, %cst_89 {dimension_numbers = #tpu.dot_dimension_numbers<[1], [0], [0], [1], [0, 0, 1, 1], [], []>} : vector<4x64xbf16>, vector<64x256xbf16>, vector<4x256xf32> -> vector<4x256xf32>
    %160 = arith.addf %152, %159 : vector<4x256xf32>
    %c2_i32_90 = arith.constant 2 : i32
    %c4_i32_91 = arith.constant 4 : i32
    %161 = arith.addi %c4_i32_91, %c2_i32_90 : i32
    %c0_92 = arith.constant 0 : index
    %c0_93 = arith.constant 0 : index
    %162 = arith.index_cast %161 : i32 to index
    %c0_94 = arith.constant 0 : index
    %c0_95 = arith.constant 0 : index
    %163 = vector.load %arg4[%c0_92, %c0_93, %162, %c0_94, %c0_95] : memref<1x1x8x4x64xf32, #tpu.memory_space<vmem>>, vector<1x1x1x4x64xf32>
    %164 = vector.shape_cast %163 : vector<1x1x1x4x64xf32> to vector<4x64xf32>
    %165 = arith.truncf %164 : vector<4x64xf32> to vector<4x64xbf16>
    %166 = arith.index_cast %c2_i32_90 : i32 to index
    %c0_96 = arith.constant 0 : index
    %c0_97 = arith.constant 0 : index
    %167 = vector.load %arg3[%166, %c0_96, %c0_97] : memref<4x64x256xbf16, #tpu.memory_space<vmem>>, vector<1x64x256xbf16>
    %168 = vector.shape_cast %167 : vector<1x64x256xbf16> to vector<64x256xbf16>
    %cst_98 = arith.constant dense<0.000000e+00> : vector<4x256xf32>
    %169 = tpu.matmul %165, %168, %cst_98 {dimension_numbers = #tpu.dot_dimension_numbers<[1], [0], [0], [1], [0, 0, 1, 1], [], []>} : vector<4x64xbf16>, vector<64x256xbf16>, vector<4x256xf32> -> vector<4x256xf32>
    %170 = arith.addf %160, %169 : vector<4x256xf32>
    %171 = arith.extf %165 : vector<4x64xbf16> to vector<4x64xf32>
    %172 = arith.subf %164, %171 : vector<4x64xf32>
    %173 = arith.truncf %172 : vector<4x64xf32> to vector<4x64xbf16>
    %174 = arith.index_cast %c2_i32_90 : i32 to index
    %c0_99 = arith.constant 0 : index
    %c0_100 = arith.constant 0 : index
    %175 = vector.load %arg3[%174, %c0_99, %c0_100] : memref<4x64x256xbf16, #tpu.memory_space<vmem>>, vector<1x64x256xbf16>
    %176 = vector.shape_cast %175 : vector<1x64x256xbf16> to vector<64x256xbf16>
    %cst_101 = arith.constant dense<0.000000e+00> : vector<4x256xf32>
    %177 = tpu.matmul %173, %176, %cst_101 {dimension_numbers = #tpu.dot_dimension_numbers<[1], [0], [0], [1], [0, 0, 1, 1], [], []>} : vector<4x64xbf16>, vector<64x256xbf16>, vector<4x256xf32> -> vector<4x256xf32>
    %178 = arith.addf %170, %177 : vector<4x256xf32>
    %179 = arith.extf %173 : vector<4x64xbf16> to vector<4x64xf32>
    %180 = arith.subf %172, %179 : vector<4x64xf32>
    %181 = arith.truncf %180 : vector<4x64xf32> to vector<4x64xbf16>
    %182 = arith.index_cast %c2_i32_90 : i32 to index
    %c0_102 = arith.constant 0 : index
    %c0_103 = arith.constant 0 : index
    %183 = vector.load %arg3[%182, %c0_102, %c0_103] : memref<4x64x256xbf16, #tpu.memory_space<vmem>>, vector<1x64x256xbf16>
    %184 = vector.shape_cast %183 : vector<1x64x256xbf16> to vector<64x256xbf16>
    %cst_104 = arith.constant dense<0.000000e+00> : vector<4x256xf32>
    %185 = tpu.matmul %181, %184, %cst_104 {dimension_numbers = #tpu.dot_dimension_numbers<[1], [0], [0], [1], [0, 0, 1, 1], [], []>} : vector<4x64xbf16>, vector<64x256xbf16>, vector<4x256xf32> -> vector<4x256xf32>
    %186 = arith.addf %178, %185 : vector<4x256xf32>
    %c3_i32_105 = arith.constant 3 : i32
    %c4_i32_106 = arith.constant 4 : i32
    %187 = arith.addi %c4_i32_106, %c3_i32_105 : i32
    %c0_107 = arith.constant 0 : index
    %c0_108 = arith.constant 0 : index
    %188 = arith.index_cast %187 : i32 to index
    %c0_109 = arith.constant 0 : index
    %c0_110 = arith.constant 0 : index
    %189 = vector.load %arg4[%c0_107, %c0_108, %188, %c0_109, %c0_110] : memref<1x1x8x4x64xf32, #tpu.memory_space<vmem>>, vector<1x1x1x4x64xf32>
    %190 = vector.shape_cast %189 : vector<1x1x1x4x64xf32> to vector<4x64xf32>
    %191 = arith.truncf %190 : vector<4x64xf32> to vector<4x64xbf16>
    %192 = arith.index_cast %c3_i32_105 : i32 to index
    %c0_111 = arith.constant 0 : index
    %c0_112 = arith.constant 0 : index
    %193 = vector.load %arg3[%192, %c0_111, %c0_112] : memref<4x64x256xbf16, #tpu.memory_space<vmem>>, vector<1x64x256xbf16>
    %194 = vector.shape_cast %193 : vector<1x64x256xbf16> to vector<64x256xbf16>
    %cst_113 = arith.constant dense<0.000000e+00> : vector<4x256xf32>
    %195 = tpu.matmul %191, %194, %cst_113 {dimension_numbers = #tpu.dot_dimension_numbers<[1], [0], [0], [1], [0, 0, 1, 1], [], []>} : vector<4x64xbf16>, vector<64x256xbf16>, vector<4x256xf32> -> vector<4x256xf32>
    %196 = arith.addf %186, %195 : vector<4x256xf32>
    %197 = arith.extf %191 : vector<4x64xbf16> to vector<4x64xf32>
    %198 = arith.subf %190, %197 : vector<4x64xf32>
    %199 = arith.truncf %198 : vector<4x64xf32> to vector<4x64xbf16>
    %200 = arith.index_cast %c3_i32_105 : i32 to index
    %c0_114 = arith.constant 0 : index
    %c0_115 = arith.constant 0 : index
    %201 = vector.load %arg3[%200, %c0_114, %c0_115] : memref<4x64x256xbf16, #tpu.memory_space<vmem>>, vector<1x64x256xbf16>
    %202 = vector.shape_cast %201 : vector<1x64x256xbf16> to vector<64x256xbf16>
    %cst_116 = arith.constant dense<0.000000e+00> : vector<4x256xf32>
    %203 = tpu.matmul %199, %202, %cst_116 {dimension_numbers = #tpu.dot_dimension_numbers<[1], [0], [0], [1], [0, 0, 1, 1], [], []>} : vector<4x64xbf16>, vector<64x256xbf16>, vector<4x256xf32> -> vector<4x256xf32>
    %204 = arith.addf %196, %203 : vector<4x256xf32>
    %205 = arith.extf %199 : vector<4x64xbf16> to vector<4x64xf32>
    %206 = arith.subf %198, %205 : vector<4x64xf32>
    %207 = arith.truncf %206 : vector<4x64xf32> to vector<4x64xbf16>
    %208 = arith.index_cast %c3_i32_105 : i32 to index
    %c0_117 = arith.constant 0 : index
    %c0_118 = arith.constant 0 : index
    %209 = vector.load %arg3[%208, %c0_117, %c0_118] : memref<4x64x256xbf16, #tpu.memory_space<vmem>>, vector<1x64x256xbf16>
    %210 = vector.shape_cast %209 : vector<1x64x256xbf16> to vector<64x256xbf16>
    %cst_119 = arith.constant dense<0.000000e+00> : vector<4x256xf32>
    %211 = tpu.matmul %207, %210, %cst_119 {dimension_numbers = #tpu.dot_dimension_numbers<[1], [0], [0], [1], [0, 0, 1, 1], [], []>} : vector<4x64xbf16>, vector<64x256xbf16>, vector<4x256xf32> -> vector<4x256xf32>
    %212 = arith.addf %204, %211 : vector<4x256xf32>
    %c4_i32_120 = arith.constant 4 : i32
    %c0_121 = arith.constant 0 : index
    %c0_122 = arith.constant 0 : index
    %c0_123 = arith.constant 0 : index
    %c256 = arith.constant 256 : index
    %213 = vector.load %arg5[%c0_121, %c0_122, %c0_123, %c256] : memref<1x1x4x512xf32, #tpu.memory_space<vmem>>, vector<1x1x4x256xf32>
    %214 = vector.shape_cast %213 : vector<1x1x4x256xf32> to vector<4x256xf32>
    %215 = vector.shape_cast %212 : vector<4x256xf32> to vector<1x1x4x256xf32>
    tpu.vector_store %arg5[%c0_121, %c0_122, %c0_123, %c256], %215 {strides = array<i32>} : memref<1x1x4x512xf32, #tpu.memory_space<vmem>>, vector<1x1x4x256xf32>,
    return
  }
  func.func @transform_0(%arg0: i32, %arg1: i32, %arg2: i32) -> (i32, i32, i32) {
    %c0_i32 = arith.constant 0 : i32
    %c0_i32_0 = arith.constant 0 : i32
    %c0_i32_1 = arith.constant 0 : i32
    %c0_i32_2 = arith.constant 0 : i32
    return %c0_i32, %c0_i32_0, %c0_i32_1 : i32, i32, i32
  }
  func.func @transform_1(%arg0: i32, %arg1: i32, %arg2: i32) -> (i32, i32, i32, i32, i32) {
    %c0_i32 = arith.constant 0 : i32
    %c0_i32_0 = arith.constant 0 : i32
    %c0_i32_1 = arith.constant 0 : i32
    return %arg0, %arg1, %c0_i32, %arg2, %c0_i32_0 : i32, i32, i32, i32, i32
  }
  func.func @transform_2(%arg0: i32, %arg1: i32, %arg2: i32) -> (i32, i32, i32, i32) {
    %c0_i32 = arith.constant 0 : i32
    %c0_i32_0 = arith.constant 0 : i32
    return %arg0, %arg1, %arg2, %c0_i32 : i32, i32, i32, i32
  }
}

</mosaic_0001>

<llo_original>
// kernel: tpu_custom_call.1
$region0: #{tpu_custom_call.1}
  #allocation0 [shape = 'u32[]', space=smem, size = 0x4, offset = 0x4, fixed_abs, tag = 'smem constant byte address 0x4 - core index']
  #allocation1 [shape = 'u32[72,128]{1,0:T(1,128)}', space=vmem, size = 0x9000, scoped, tag = 'internal scratch']
  %s0 = inlined_call_operand.hbm [shape: bf16[4,64,256], index: 0, kind: input, shape index: {}]
  %s1 = inlined_call_operand.hbm [shape: f32[2,4,8,4,64], index: 1, kind: input, shape index: {}]
  %s2 = inlined_call_operand.hbm [shape: f32[2,4,4,512], index: 2, kind: output, shape index: {}]
  %s3 = sld [smem:[#allocation0]]
  $region49: #{tpu_custom_call.1} parent=0
    _
  %s5 = ssub.s32 1, %s3
  %s6 = scalar_select 0, %s5, %s3
  $region1: #{tpu_custom_call.1} parent=0
    #allocation2 [shape = 'u8[131072]{0}', space=vmem, size = 0x20000, scoped, tag = 'input window, operand 0, single buffered']
    #allocation3 [shape = 's32[2]{0}', space=sflag, size = 0x8, scoped, tag = 'scoped memory for tpu_custom_call.1']
    #allocation4 [shape = 's32[2]{0}', space=sflag, size = 0x8, scoped, tag = 'scoped memory for tpu_custom_call.1']
    #allocation5 [shape = 'u8[32768]{0}', space=vmem, size = 0x8000, scoped, tag = 'input window, operand 1']
    #allocation6 [shape = 's32[2]{0}', space=sflag, size = 0x8, scoped, tag = 'scoped memory for tpu_custom_call.1']
    #allocation7 [shape = 'u8[16384]{0}', space=vmem, size = 0x4000, scoped, tag = 'output window, operand 0']
    %7 = vsyncpa [#allocation3], 0
    %8 = vsyncpa [#allocation6], 0
    %s9 = scalar_lea.sflag [#allocation6], 1
    %10 = vsyncpa %s9, 0
    %11 = vsyncpa [#allocation4], 0
    %s12 = scalar_lea.sflag [#allocation4], 1
    %13 = vsyncpa %s12, 0
    loop: start=0, step=1, limit=10
    $region2: #{tpu_custom_call.1} parent=1 // loop_pre_header
      _
    $region3: #{tpu_custom_call.1} parent=1 // loop_header
      %s15 = sphi 0, %s19
      %p16 = scmp.ge.s32.totalorder %s15, 10
      %s22 = sphi 0, %s41
      %s23 = sphi 0, %s37
      %s24 = sphi 0, %s33
      %s25 = sphi 0, %s22
      %s26 = sphi 0, %s23
      %s27 = sphi 0, %s24
      %s28 = sphi 0, %s25
      %s29 = sphi 0, %s26
      %s30 = sphi 0, %s27
      %s42 = sphi 0, %s42
      %s44 = sphi 0, %s42
      %s45 = sphi 0, %s44
      %s59 = sphi 0, %s45
      %s69 = sphi 0, %s71
      %s72 = sphi 0, %s69
      %s73 = sphi 0, %s72
      %s89 = sphi 0, %s73
      %s99 = sphi 0, %s101
      %s102 = sphi 0, %s99
      %s103 = sphi 0, %s102
      %s119 = sphi 0, %s103
    $region4: #{tpu_custom_call.1} parent=1 // loop_header_branch
      %18 = sbr.rel (%p16) target = $region8
    $region5: #{tpu_custom_call.1} parent=1 // loop_body
      %s20 = ssub.s32 %s15, 1
      %s21 = ssub.s32 %s15, 2
      %s31 = sadd.s32 1, %s24
      %p32 = scmp.ge.s32.totalorder %s31, 1
      %s33 = scalar_select %p32, 0, %s31
      %s34 = sadd.s32 1, %s23
      %s35 = scalar_select %p32, %s34, %s23
      %p36 = scmp.ge.s32.totalorder %s35, 4
      %s37 = scalar_select %p36, 0, %s35
      %s38 = sadd.s32 1, %s22
      %s39 = scalar_select %p36, %s38, %s22
      %p40 = scmp.ge.s32.totalorder %s39, 2
      %s41 = scalar_select %p40, 0, %s39
      %s43 = sadd.s32 %s42, 1
      %p46 = scmp.eq.s32.totalorder %s15, 7
      %p47 = scmp.ne.s32.totalorder %s42, %s44
      %p48 = scmp.eq.s32.totalorder %s15, 0
      %p49 = por %p47, %p48
      %p50 = scmp.ne.s32.totalorder %s42, %s44
      %p51 = scmp.eq.s32.totalorder %s20, 7
      %p52 = por %p50, %p51
      %p53 = scmp.ne.s32.totalorder %s44, %s45
      %p54 = scmp.eq.s32.totalorder %s20, 0
      %p55 = por %p53, %p54
      %p56 = scmp.ne.s32.totalorder %s44, %s45
      %p57 = scmp.eq.s32.totalorder %s21, 7
      %p58 = por %p56, %p57
      %p60 = scmp.ne.s32.totalorder %s45, %s59
      %p61 = scmp.eq.s32.totalorder %s21, 0
      %p62 = por %p60, %p61
      %s63 = ssub.s32 %s22, %s41
      %s64 = ssub.s32 %s23, %s37
      %s65 = sor.u32 %s63, %s64
      %s66 = ssub.s32 %s24, %s33
      %s67 = sor.u32 %s65, %s66
      %p68 = scmp.eq.s32.totalorder %s67, 0
      %s70 = sadd.s32 %s69, 1
      %s71 = scalar_select %p68, %s69, %s70
      %p74 = pneg %p68
      %p75 = scmp.eq.s32.totalorder %s15, 7
      %p76 = por %p74, %p75
      %p77 = scmp.ne.s32.totalorder %s69, %s72
      %p78 = scmp.eq.s32.totalorder %s15, 0
      %p79 = por %p77, %p78
      %p80 = scmp.ne.s32.totalorder %s69, %s72
      %p81 = scmp.eq.s32.totalorder %s20, 7
      %p82 = por %p80, %p81
      %p83 = scmp.ne.s32.totalorder %s72, %s73
      %p84 = scmp.eq.s32.totalorder %s20, 0
      %p85 = por %p83, %p84
      %p86 = scmp.ne.s32.totalorder %s72, %s73
      %p87 = scmp.eq.s32.totalorder %s21, 7
      %p88 = por %p86, %p87
      %p90 = scmp.ne.s32.totalorder %s73, %s89
      %p91 = scmp.eq.s32.totalorder %s21, 0
      %p92 = por %p90, %p91
      %s93 = ssub.s32 %s22, %s41
      %s94 = ssub.s32 %s23, %s37
      %s95 = sor.u32 %s93, %s94
      %s96 = ssub.s32 %s24, %s33
      %s97 = sor.u32 %s95, %s96
      %p98 = scmp.eq.s32.totalorder %s97, 0
      %s100 = sadd.s32 %s99, 1
      %s101 = scalar_select %p98, %s99, %s100
      %p104 = pneg %p98
      %p105 = scmp.eq.s32.totalorder %s15, 7
      %p106 = por %p104, %p105
      %p107 = scmp.ne.s32.totalorder %s99, %s102
      %p108 = scmp.eq.s32.totalorder %s15, 0
      %p109 = por %p107, %p108
      %p110 = scmp.ne.s32.totalorder %s99, %s102
      %p111 = scmp.eq.s32.totalorder %s20, 7
      %p112 = por %p110, %p111
      %p113 = scmp.ne.s32.totalorder %s102, %s103
      %p114 = scmp.eq.s32.totalorder %s20, 0
      %p115 = por %p113, %p114
      %p116 = scmp.ne.s32.totalorder %s102, %s103
      %p117 = scmp.eq.s32.totalorder %s21, 7
      %p118 = por %p116, %p117
      %p120 = scmp.ne.s32.totalorder %s103, %s119
      %p121 = scmp.eq.s32.totalorder %s21, 0
      %p122 = por %p120, %p121
      %p123 = scmp.le.s32.totalorder 1, %s15
      %p124 = scmp.lt.s32.totalorder %s15, 9
      %p125 = pnand %p123, %p124
      %p126 = pneg %p125
      // Predicated region
      $region9: #{tpu_custom_call.1} parent=5 // pred_check
        _
      $region10: #{tpu_custom_call.1} parent=5 // pred_check_branch
        %128 = sbr.rel (%p125) target = $region12
      $region11: #{tpu_custom_call.1} parent=5 // pred_region
        %s129 = ssub.s32 %s15, 1
        // Predicated region
        $region13: #{tpu_custom_call.1} parent=11 // pred_check
          %p130 = pneg %p55
        $region14: #{tpu_custom_call.1} parent=11 // pred_check_branch
          %132 = sbr.rel (%p130) target = $region16
        $region15: #{tpu_custom_call.1} parent=11 // pred_region
          %134 = vsyncadd [#allocation3], 0
          %s135 = sshll.u32 %s0, 4
          %s136 = int_to_ptr.hbm [resolvable:$true] %s135
          %s137 = sshll.u32 [#allocation2], 4
          %s138 = int_to_ptr.vmem [resolvable:$true] %s137
          %143 = dma.hbm_to_vmem [thread:$0]  %s136, 4096, %s138, [#allocation3], 128, 128, 8
        $region16: #{tpu_custom_call.1} parent=11 // pred_fallthru
          _
      $region12: #{tpu_custom_call.1} parent=5 // pred_fallthru
        _
      %p144 = scmp.lt.s32.totalorder %s15, 8
      // Predicated region
      $region17: #{tpu_custom_call.1} parent=5 // pred_check
        %p145 = pneg %p144
      $region18: #{tpu_custom_call.1} parent=5 // pred_check_branch
        %147 = sbr.rel (%p145) target = $region20
      $region19: #{tpu_custom_call.1} parent=5 // pred_region
        // Predicated region
        $region21: #{tpu_custom_call.1} parent=19 // pred_check
          %p148 = pneg %p79
        $region22: #{tpu_custom_call.1} parent=19 // pred_check_branch
          %150 = sbr.rel (%p148) target = $region24
        $region23: #{tpu_custom_call.1} parent=19 // pred_region
          %s151 = sand.u32 %s69, 1
          %s152 = scalar_lea.sflag [#allocation6], %s151
          %s153 = sand.u32 %s69, 1
          %s154 = smul.addr %s153, 32
          %s155 = scalar_lea.vmem [#allocation5], %s154
          %157 = vsyncadd %s152, 0
          %s158 = smul.addr %s23, 8
          %s159 = sadd.s32 %s24, %s158
          %s160 = smul.addr %s22, 32
          %s161 = sadd.s32 %s159, %s160
          %s162 = smul.addr %s161, 4
          %s163 = scalar_lea.hbm %s1, %s162
          %s164 = sshll.u32 %s163, 4
          %s165 = int_to_ptr.hbm [resolvable:$true] %s164
          %s166 = sshll.u32 %s155, 4
          %s167 = int_to_ptr.vmem [resolvable:$true] %s166
          %172 = dma.hbm_to_vmem [thread:$0]  %s165, 512, %s167, %s152, 64, 64, 4
        $region24: #{tpu_custom_call.1} parent=19 // pred_fallthru
          _
      $region20: #{tpu_custom_call.1} parent=5 // pred_fallthru
        _
      %p173 = scmp.le.s32.totalorder 1, %s15
      %p174 = scmp.lt.s32.totalorder %s15, 9
      %p175 = pnand %p173, %p174
      %p176 = pneg %p175
      // Predicated region
      $region25: #{tpu_custom_call.1} parent=5 // pred_check
        _
      $region26: #{tpu_custom_call.1} parent=5 // pred_check_branch
        %178 = sbr.rel (%p175) target = $region28
      $region27: #{tpu_custom_call.1} parent=5 // pred_region
        %s179 = ssub.s32 %s15, 1
        // Predicated region
        $region29: #{tpu_custom_call.1} parent=27 // pred_check
          %p180 = pneg %p55
        $region30: #{tpu_custom_call.1} parent=27 // pred_check_branch
          %182 = sbr.rel (%p180) target = $region32
        $region31: #{tpu_custom_call.1} parent=27 // pred_region
          %184 = dma.done [#allocation3], 4096
        $region32: #{tpu_custom_call.1} parent=27 // pred_fallthru
          _
        %s185 = sand.u32 %s72, 1
        %s186 = scalar_lea.sflag [#allocation6], %s185
        %s187 = sand.u32 %s72, 1
        %s188 = smul.addr %s187, 32
        %s189 = scalar_lea.vmem [#allocation5], %s188
        // Predicated region
        $region33: #{tpu_custom_call.1} parent=27 // pred_check
          %p190 = pneg %p85
        $region34: #{tpu_custom_call.1} parent=27 // pred_check_branch
          %192 = sbr.rel (%p190) target = $region36
        $region35: #{tpu_custom_call.1} parent=27 // pred_region
          %194 = dma.done %s186, 512
        $region36: #{tpu_custom_call.1} parent=27 // pred_fallthru
          _
        %p195 = pneg %p55
        %p196 = pneg %p52
        %s197 = sand.u32 %s72, 1
        %s198 = scalar_lea.sflag [#allocation6], %s197
        %s199 = sand.u32 %s72, 1
        %s200 = smul.addr %s199, 32
        %s201 = scalar_lea.vmem [#allocation5], %s200
        %p202 = pneg %p85
        %p203 = pneg %p82
        %p204 = pneg %p115
        %p205 = pneg %p112
        %s206 = sand.u32 %s102, 1
        %s207 = scalar_lea.sflag [#allocation4], %s206
        %s208 = sand.u32 %s102, 1
        %s209 = smul.addr %s208, 16
        %s210 = scalar_lea.vmem [#allocation7], %s209
        %v212 = vld [vmem:[%s189] sm:$0xf]
        %v213 = vpack.c.bf16 %v212, %v212
        %v214 = vld [vmem:[#allocation2] sm:$0xff]
        %v215 = vld [vmem:[#allocation2 + $0x8] sm:$0xff]
        %v216 = vld [vmem:[#allocation2 + $0x10] sm:$0xff]
        %v217 = vld [vmem:[#allocation2 + $0x18] sm:$0xff]
        %v218 = vld [vmem:[#allocation2 + $0x20] sm:$0xff]
        %v219 = vld [vmem:[#allocation2 + $0x28] sm:$0xff]
        %v220 = vld [vmem:[#allocation2 + $0x30] sm:$0xff]
        %v221 = vld [vmem:[#allocation2 + $0x38] sm:$0xff]
        %v222 = vunpack.c.l.bf16 %v213
        %v223 = vsub.f32 %v212, %v222
        %v224 = vpack.c.bf16 %v223, %v223
        %v233 = vunpack.c.l.b16 %v214
        %v234 = vunpack.c.h.b16 %v214
        %v235 = vunpack.c.l.b16 %v215
        %v236 = vunpack.c.h.b16 %v215
        %v237 = vunpack.c.l.b16 %v216
        %v238 = vunpack.c.h.b16 %v216
        %v239 = vunpack.c.l.b16 %v217
        %v240 = vunpack.c.h.b16 %v217
        %v241 = vunpack.c.l.b16 %v218
        %v242 = vunpack.c.h.b16 %v218
        %v243 = vunpack.c.l.b16 %v219
        %v244 = vunpack.c.h.b16 %v219
        %v245 = vunpack.c.l.b16 %v220
        %v246 = vunpack.c.h.b16 %v220
        %v247 = vunpack.c.l.b16 %v221
        %v248 = vunpack.c.h.b16 %v221
        %v249 = vpack.c.b16 %v235, %v233
        %v250 = vpack.c.b16 %v236, %v234
        %v251 = vpack.c.b16 %v239, %v237
        %v252 = vpack.c.b16 %v240, %v238
        %v253 = vpack.c.b16 %v243, %v241
        %v254 = vpack.c.b16 %v244, %v242
        %v255 = vpack.c.b16 %v247, %v245
        %v256 = vpack.c.b16 %v248, %v246
        %vm265 = vcmask 523264
        %v267 = vsel %vm265, %v224, 0
        %269 = vmatpush.bf16.msra.mxu0 0
        %270 = vmatpush.bf16.msra.mxu0 0
        %271 = vmatpush.bf16.msra.mxu0 0
        %272 = vmatpush.bf16.msra.mxu0 0
        %273 = vmatpush.bf16.msra.mxu0 %v255
        %274 = vmatpush.bf16.msra.mxu0 %v253
        %275 = vmatpush.bf16.msra.mxu0 %v251
        %276 = vmatpush.bf16.msra.mxu0 %v249
        %277 = vmatmul.bf16.gmra.mxu0 %v267
        %v278 = vpop.f32.mrf.mxu0
        %v279 = vadd.f32 0.0, %v278
        %v280 = vpop.f32.mrf.mxu0
        %281 = vdwg.mxu0
        %282 = vmatpush.bf16.msra.mxu0 0
        %283 = vmatpush.bf16.msra.mxu0 0
        %284 = vmatpush.bf16.msra.mxu0 0
        %285 = vmatpush.bf16.msra.mxu0 0
        %286 = vmatpush.bf16.msra.mxu0 %v256
        %287 = vmatpush.bf16.msra.mxu0 %v254
        %288 = vmatpush.bf16.msra.mxu0 %v252
        %289 = vmatpush.bf16.msra.mxu0 %v250
        %290 = vmatmul.bf16.gmra.mxu0 %v267
        %v291 = vpop.f32.mrf.mxu0
        %v292 = vadd.f32 0.0, %v291
        %v293 = vpop.f32.mrf.mxu0
        %294 = vdwg.mxu0
        %v296 = vsel %vm265, %v213, 0
        %298 = vmatpush.bf16.msra.mxu0 0
        %299 = vmatpush.bf16.msra.mxu0 0
        %300 = vmatpush.bf16.msra.mxu0 0
        %301 = vmatpush.bf16.msra.mxu0 0
        %302 = vmatpush.bf16.msra.mxu0 %v255
        %303 = vmatpush.bf16.msra.mxu0 %v253
        %304 = vmatpush.bf16.msra.mxu0 %v251
        %305 = vmatpush.bf16.msra.mxu0 %v249
        %306 = vmatmul.bf16.gmra.mxu0 %v296
        %v307 = vpop.f32.mrf.mxu0
        %v308 = vadd.f32 %v279, %v307
        %v309 = vpop.f32.mrf.mxu0
        %310 = vdwg.mxu0
        %311 = vmatpush.bf16.msra.mxu0 0
        %312 = vmatpush.bf16.msra.mxu0 0
        %313 = vmatpush.bf16.msra.mxu0 0
        %314 = vmatpush.bf16.msra.mxu0 0
        %315 = vmatpush.bf16.msra.mxu0 %v256
        %316 = vmatpush.bf16.msra.mxu0 %v254
        %317 = vmatpush.bf16.msra.mxu0 %v252
        %318 = vmatpush.bf16.msra.mxu0 %v250
        %319 = vmatmul.bf16.gmra.mxu0 %v296
        %v320 = vpop.f32.mrf.mxu0
        %v321 = vadd.f32 %v292, %v320
        %v322 = vpop.f32.mrf.mxu0
        %323 = vdwg.mxu0
        %v324 = vunpack.c.l.bf16 %v224
        %v325 = vsub.f32 %v223, %v324
        %v326 = vpack.c.bf16 %v325, %v325
        %v328 = vsel %vm265, %v326, 0
        %330 = vmatpush.bf16.msra.mxu0 0
        %331 = vmatpush.bf16.msra.mxu0 0
        %332 = vmatpush.bf16.msra.mxu0 0
        %333 = vmatpush.bf16.msra.mxu0 0
        %334 = vmatpush.bf16.msra.mxu0 %v255
        %335 = vmatpush.bf16.msra.mxu0 %v253
        %336 = vmatpush.bf16.msra.mxu0 %v251
        %337 = vmatpush.bf16.msra.mxu0 %v249
        %338 = vmatmul.bf16.gmra.mxu0 %v328
        %v339 = vpop.f32.mrf.mxu0
        %v340 = vadd.f32 0.0, %v339
        %v341 = vpop.f32.mrf.mxu0
        %342 = vdwg.mxu0
        %343 = vmatpush.bf16.msra.mxu0 0
        %344 = vmatpush.bf16.msra.mxu0 0
        %345 = vmatpush.bf16.msra.mxu0 0
        %346 = vmatpush.bf16.msra.mxu0 0
        %347 = vmatpush.bf16.msra.mxu0 %v256
        %348 = vmatpush.bf16.msra.mxu0 %v254
        %349 = vmatpush.bf16.msra.mxu0 %v252
        %350 = vmatpush.bf16.msra.mxu0 %v250
        %351 = vmatmul.bf16.gmra.mxu0 %v328
        %v352 = vpop.f32.mrf.mxu0
        %v353 = vadd.f32 0.0, %v352
        %v354 = vpop.f32.mrf.mxu0
        %355 = vdwg.mxu0
        %v356 = vadd.f32 %v308, %v340
        %v357 = vadd.f32 %v321, %v353
        %s358 = scalar_lea.vmem %s189, 4 [#allocation5]
        %v359 = vld [vmem:[%s358] sm:$0xf]
        %v360 = vpack.c.bf16 %v359, %v359
        %s361 = scalar_lea.vmem [#allocation2], 64
        %v362 = vld [vmem:[%s361] sm:$0xff]
        %v363 = vld [vmem:[%s361 + $0x8] sm:$0xff]
        %v364 = vld [vmem:[%s361 + $0x10] sm:$0xff]
        %v365 = vld [vmem:[%s361 + $0x18] sm:$0xff]
        %v366 = vld [vmem:[%s361 + $0x20] sm:$0xff]
        %v367 = vld [vmem:[%s361 + $0x28] sm:$0xff]
        %v368 = vld [vmem:[%s361 + $0x30] sm:$0xff]
        %v369 = vld [vmem:[%s361 + $0x38] sm:$0xff]
        %v378 = vunpack.c.l.b16 %v362
        %v379 = vunpack.c.h.b16 %v362
        %v380 = vunpack.c.l.b16 %v363
        %v381 = vunpack.c.h.b16 %v363
        %v382 = vunpack.c.l.b16 %v364
        %v383 = vunpack.c.h.b16 %v364
        %v384 = vunpack.c.l.b16 %v365
        %v385 = vunpack.c.h.b16 %v365
        %v386 = vunpack.c.l.b16 %v366
        %v387 = vunpack.c.h.b16 %v366
        %v388 = vunpack.c.l.b16 %v367
        %v389 = vunpack.c.h.b16 %v367
        %v390 = vunpack.c.l.b16 %v368
        %v391 = vunpack.c.h.b16 %v368
        %v392 = vunpack.c.l.b16 %v369
        %v393 = vunpack.c.h.b16 %v369
        %v394 = vpack.c.b16 %v380, %v378
        %v395 = vpack.c.b16 %v381, %v379
        %v396 = vpack.c.b16 %v384, %v382
        %v397 = vpack.c.b16 %v385, %v383
        %v398 = vpack.c.b16 %v388, %v386
        %v399 = vpack.c.b16 %v389, %v387
        %v400 = vpack.c.b16 %v392, %v390
        %v401 = vpack.c.b16 %v393, %v391
        %v411 = vsel %vm265, %v360, 0
        %413 = vmatpush.bf16.msra.mxu0 0
        %414 = vmatpush.bf16.msra.mxu0 0
        %415 = vmatpush.bf16.msra.mxu0 0
        %416 = vmatpush.bf16.msra.mxu0 0
        %417 = vmatpush.bf16.msra.mxu0 %v400
        %418 = vmatpush.bf16.msra.mxu0 %v398
        %419 = vmatpush.bf16.msra.mxu0 %v396
        %420 = vmatpush.bf16.msra.mxu0 %v394
        %421 = vmatmul.bf16.gmra.mxu0 %v411
        %v422 = vpop.f32.mrf.mxu0
        %v423 = vadd.f32 0.0, %v422
        %v424 = vpop.f32.mrf.mxu0
        %425 = vdwg.mxu0
        %426 = vmatpush.bf16.msra.mxu0 0
        %427 = vmatpush.bf16.msra.mxu0 0
        %428 = vmatpush.bf16.msra.mxu0 0
        %429 = vmatpush.bf16.msra.mxu0 0
        %430 = vmatpush.bf16.msra.mxu0 %v401
        %431 = vmatpush.bf16.msra.mxu0 %v399
        %432 = vmatpush.bf16.msra.mxu0 %v397
        %433 = vmatpush.bf16.msra.mxu0 %v395
        %434 = vmatmul.bf16.gmra.mxu0 %v411
        %v435 = vpop.f32.mrf.mxu0
        %v436 = vadd.f32 0.0, %v435
        %v437 = vpop.f32.mrf.mxu0
        %438 = vdwg.mxu0
        %v439 = vadd.f32 %v356, %v423
        %v440 = vadd.f32 %v357, %v436
        %v441 = vunpack.c.l.bf16 %v360
        %v442 = vsub.f32 %v359, %v441
        %v443 = vpack.c.bf16 %v442, %v442
        %v445 = vsel %vm265, %v443, 0
        %447 = vmatpush.bf16.msra.mxu0 0
        %448 = vmatpush.bf16.msra.mxu0 0
        %449 = vmatpush.bf16.msra.mxu0 0
        %450 = vmatpush.bf16.msra.mxu0 0
        %451 = vmatpush.bf16.msra.mxu0 %v400
        %452 = vmatpush.bf16.msra.mxu0 %v398
        %453 = vmatpush.bf16.msra.mxu0 %v396
        %454 = vmatpush.bf16.msra.mxu0 %v394
        %455 = vmatmul.bf16.gmra.mxu0 %v445
        %v456 = vpop.f32.mrf.mxu0
        %v457 = vadd.f32 0.0, %v456
        %v458 = vpop.f32.mrf.mxu0
        %459 = vdwg.mxu0
        %460 = vmatpush.bf16.msra.mxu0 0
        %461 = vmatpush.bf16.msra.mxu0 0
        %462 = vmatpush.bf16.msra.mxu0 0
        %463 = vmatpush.bf16.msra.mxu0 0
        %464 = vmatpush.bf16.msra.mxu0 %v401
        %465 = vmatpush.bf16.msra.mxu0 %v399
        %466 = vmatpush.bf16.msra.mxu0 %v397
        %467 = vmatpush.bf16.msra.mxu0 %v395
        %468 = vmatmul.bf16.gmra.mxu0 %v445
        %v469 = vpop.f32.mrf.mxu0
        %v470 = vadd.f32 0.0, %v469
        %v471 = vpop.f32.mrf.mxu0
        %472 = vdwg.mxu0
        %v473 = vadd.f32 %v439, %v457
        %v474 = vadd.f32 %v440, %v470
        %v475 = vunpack.c.l.bf16 %v443
        %v476 = vsub.f32 %v442, %v475
        %v477 = vpack.c.bf16 %v476, %v476
        %v479 = vsel %vm265, %v477, 0
        %481 = vmatpush.bf16.msra.mxu0 0
        %482 = vmatpush.bf16.msra.mxu0 0
        %483 = vmatpush.bf16.msra.mxu0 0
        %484 = vmatpush.bf16.msra.mxu0 0
        %485 = vmatpush.bf16.msra.mxu0 %v400
        %486 = vmatpush.bf16.msra.mxu0 %v398
        %487 = vmatpush.bf16.msra.mxu0 %v396
        %488 = vmatpush.bf16.msra.mxu0 %v394
        %489 = vmatmul.bf16.gmra.mxu0 %v479
        %v490 = vpop.f32.mrf.mxu0
        %v491 = vadd.f32 0.0, %v490
        %v492 = vpop.f32.mrf.mxu0
        %493 = vdwg.mxu0
        %494 = vmatpush.bf16.msra.mxu0 0
        %495 = vmatpush.bf16.msra.mxu0 0
        %496 = vmatpush.bf16.msra.mxu0 0
        %497 = vmatpush.bf16.msra.mxu0 0
        %498 = vmatpush.bf16.msra.mxu0 %v401
        %499 = vmatpush.bf16.msra.mxu0 %v399
        %500 = vmatpush.bf16.msra.mxu0 %v397
        %501 = vmatpush.bf16.msra.mxu0 %v395
        %502 = vmatmul.bf16.gmra.mxu0 %v479
        %v503 = vpop.f32.mrf.mxu0
        %v504 = vadd.f32 0.0, %v503
        %v505 = vpop.f32.mrf.mxu0
        %506 = vdwg.mxu0
        %v507 = vadd.f32 %v473, %v491
        %v508 = vadd.f32 %v474, %v504
        %s509 = scalar_lea.vmem %s189, 8 [#allocation5]
        %v510 = vld [vmem:[%s509] sm:$0xf]
        %v511 = vpack.c.bf16 %v510, %v510
        %s512 = scalar_lea.vmem [#allocation2], 128
        %v513 = vld [vmem:[%s512] sm:$0xff]
        %v514 = vld [vmem:[%s512 + $0x8] sm:$0xff]
        %v515 = vld [vmem:[%s512 + $0x10] sm:$0xff]
        %v516 = vld [vmem:[%s512 + $0x18] sm:$0xff]
        %v517 = vld [vmem:[%s512 + $0x20] sm:$0xff]
        %v518 = vld [vmem:[%s512 + $0x28] sm:$0xff]
        %v519 = vld [vmem:[%s512 + $0x30] sm:$0xff]
        %v520 = vld [vmem:[%s512 + $0x38] sm:$0xff]
        %v529 = vunpack.c.l.b16 %v513
        %v530 = vunpack.c.h.b16 %v513
        %v531 = vunpack.c.l.b16 %v514
        %v532 = vunpack.c.h.b16 %v514
        %v533 = vunpack.c.l.b16 %v515
        %v534 = vunpack.c.h.b16 %v515
        %v535 = vunpack.c.l.b16 %v516
        %v536 = vunpack.c.h.b16 %v516
        %v537 = vunpack.c.l.b16 %v517
        %v538 = vunpack.c.h.b16 %v517
        %v539 = vunpack.c.l.b16 %v518
        %v540 = vunpack.c.h.b16 %v518
        %v541 = vunpack.c.l.b16 %v519
        %v542 = vunpack.c.h.b16 %v519
        %v543 = vunpack.c.l.b16 %v520
        %v544 = vunpack.c.h.b16 %v520
        %v545 = vpack.c.b16 %v531, %v529
        %v546 = vpack.c.b16 %v532, %v530
        %v547 = vpack.c.b16 %v535, %v533
        %v548 = vpack.c.b16 %v536, %v534
        %v549 = vpack.c.b16 %v539, %v537
        %v550 = vpack.c.b16 %v540, %v538
        %v551 = vpack.c.b16 %v543, %v541
        %v552 = vpack.c.b16 %v544, %v542
        %v562 = vsel %vm265, %v511, 0
        %564 = vmatpush.bf16.msra.mxu0 0
        %565 = vmatpush.bf16.msra.mxu0 0
        %566 = vmatpush.bf16.msra.mxu0 0
        %567 = vmatpush.bf16.msra.mxu0 0
        %568 = vmatpush.bf16.msra.mxu0 %v551
        %569 = vmatpush.bf16.msra.mxu0 %v549
        %570 = vmatpush.bf16.msra.mxu0 %v547
        %571 = vmatpush.bf16.msra.mxu0 %v545
        %572 = vmatmul.bf16.gmra.mxu0 %v562
        %v573 = vpop.f32.mrf.mxu0
        %v574 = vadd.f32 0.0, %v573
        %v575 = vpop.f32.mrf.mxu0
        %576 = vdwg.mxu0
        %577 = vmatpush.bf16.msra.mxu0 0
        %578 = vmatpush.bf16.msra.mxu0 0
        %579 = vmatpush.bf16.msra.mxu0 0
        %580 = vmatpush.bf16.msra.mxu0 0
        %581 = vmatpush.bf16.msra.mxu0 %v552
        %582 = vmatpush.bf16.msra.mxu0 %v550
        %583 = vmatpush.bf16.msra.mxu0 %v548
        %584 = vmatpush.bf16.msra.mxu0 %v546
        %585 = vmatmul.bf16.gmra.mxu0 %v562
        %v586 = vpop.f32.mrf.mxu0
        %v587 = vadd.f32 0.0, %v586
        %v588 = vpop.f32.mrf.mxu0
        %589 = vdwg.mxu0
        %v590 = vadd.f32 %v507, %v574
        %v591 = vadd.f32 %v508, %v587
        %v592 = vunpack.c.l.bf16 %v511
        %v593 = vsub.f32 %v510, %v592
        %v594 = vpack.c.bf16 %v593, %v593
        %v596 = vsel %vm265, %v594, 0
        %598 = vmatpush.bf16.msra.mxu0 0
        %599 = vmatpush.bf16.msra.mxu0 0
        %600 = vmatpush.bf16.msra.mxu0 0
        %601 = vmatpush.bf16.msra.mxu0 0
        %602 = vmatpush.bf16.msra.mxu0 %v551
        %603 = vmatpush.bf16.msra.mxu0 %v549
        %604 = vmatpush.bf16.msra.mxu0 %v547
        %605 = vmatpush.bf16.msra.mxu0 %v545
        %606 = vmatmul.bf16.gmra.mxu0 %v596
        %v607 = vpop.f32.mrf.mxu0
        %v608 = vadd.f32 0.0, %v607
        %v609 = vpop.f32.mrf.mxu0
        %610 = vdwg.mxu0
        %611 = vmatpush.bf16.msra.mxu0 0
        %612 = vmatpush.bf16.msra.mxu0 0
        %613 = vmatpush.bf16.msra.mxu0 0
        %614 = vmatpush.bf16.msra.mxu0 0
        %615 = vmatpush.bf16.msra.mxu0 %v552
        %616 = vmatpush.bf16.msra.mxu0 %v550
        %617 = vmatpush.bf16.msra.mxu0 %v548
        %618 = vmatpush.bf16.msra.mxu0 %v546
        %619 = vmatmul.bf16.gmra.mxu0 %v596
        %v620 = vpop.f32.mrf.mxu0
        %v621 = vadd.f32 0.0, %v620
        %v622 = vpop.f32.mrf.mxu0
        %623 = vdwg.mxu0
        %v624 = vadd.f32 %v590, %v608
        %v625 = vadd.f32 %v591, %v621
        %v626 = vunpack.c.l.bf16 %v594
        %v627 = vsub.f32 %v593, %v626
        %v628 = vpack.c.bf16 %v627, %v627
        %v630 = vsel %vm265, %v628, 0
        %632 = vmatpush.bf16.msra.mxu0 0
        %633 = vmatpush.bf16.msra.mxu0 0
        %634 = vmatpush.bf16.msra.mxu0 0
        %635 = vmatpush.bf16.msra.mxu0 0
        %636 = vmatpush.bf16.msra.mxu0 %v551
        %637 = vmatpush.bf16.msra.mxu0 %v549
        %638 = vmatpush.bf16.msra.mxu0 %v547
        %639 = vmatpush.bf16.msra.mxu0 %v545
        %640 = vmatmul.bf16.gmra.mxu0 %v630
        %v641 = vpop.f32.mrf.mxu0
        %v642 = vadd.f32 0.0, %v641
        %v643 = vpop.f32.mrf.mxu0
        %644 = vdwg.mxu0
        %645 = vmatpush.bf16.msra.mxu0 0
        %646 = vmatpush.bf16.msra.mxu0 0
        %647 = vmatpush.bf16.msra.mxu0 0
        %648 = vmatpush.bf16.msra.mxu0 0
        %649 = vmatpush.bf16.msra.mxu0 %v552
        %650 = vmatpush.bf16.msra.mxu0 %v550
        %651 = vmatpush.bf16.msra.mxu0 %v548
        %652 = vmatpush.bf16.msra.mxu0 %v546
        %653 = vmatmul.bf16.gmra.mxu0 %v630
        %v654 = vpop.f32.mrf.mxu0
        %v655 = vadd.f32 0.0, %v654
        %v656 = vpop.f32.mrf.mxu0
        %657 = vdwg.mxu0
        %v658 = vadd.f32 %v624, %v642
        %v659 = vadd.f32 %v625, %v655
        %s660 = scalar_lea.vmem %s189, 12 [#allocation5]
        %v661 = vld [vmem:[%s660] sm:$0xf]
        %v662 = vpack.c.bf16 %v661, %v661
        %s663 = scalar_lea.vmem [#allocation2], 192
        %v664 = vld [vmem:[%s663] sm:$0xff]
        %v665 = vld [vmem:[%s663 + $0x8] sm:$0xff]
        %v666 = vld [vmem:[%s663 + $0x10] sm:$0xff]
        %v667 = vld [vmem:[%s663 + $0x18] sm:$0xff]
        %v668 = vld [vmem:[%s663 + $0x20] sm:$0xff]
        %v669 = vld [vmem:[%s663 + $0x28] sm:$0xff]
        %v670 = vld [vmem:[%s663 + $0x30] sm:$0xff]
        %v671 = vld [vmem:[%s663 + $0x38] sm:$0xff]
        %v680 = vunpack.c.l.b16 %v664
        %v681 = vunpack.c.h.b16 %v664
        %v682 = vunpack.c.l.b16 %v665
        %v683 = vunpack.c.h.b16 %v665
        %v684 = vunpack.c.l.b16 %v666
        %v685 = vunpack.c.h.b16 %v666
        %v686 = vunpack.c.l.b16 %v667
        %v687 = vunpack.c.h.b16 %v667
        %v688 = vunpack.c.l.b16 %v668
        %v689 = vunpack.c.h.b16 %v668
        %v690 = vunpack.c.l.b16 %v669
        %v691 = vunpack.c.h.b16 %v669
        %v692 = vunpack.c.l.b16 %v670
        %v693 = vunpack.c.h.b16 %v670
        %v694 = vunpack.c.l.b16 %v671
        %v695 = vunpack.c.h.b16 %v671
        %v696 = vpack.c.b16 %v682, %v680
        %v697 = vpack.c.b16 %v683, %v681
        %v698 = vpack.c.b16 %v686, %v684
        %v699 = vpack.c.b16 %v687, %v685
        %v700 = vpack.c.b16 %v690, %v688
        %v701 = vpack.c.b16 %v691, %v689
        %v702 = vpack.c.b16 %v694, %v692
        %v703 = vpack.c.b16 %v695, %v693
        %v713 = vsel %vm265, %v662, 0
        %715 = vmatpush.bf16.msra.mxu0 0
        %716 = vmatpush.bf16.msra.mxu0 0
        %717 = vmatpush.bf16.msra.mxu0 0
        %718 = vmatpush.bf16.msra.mxu0 0
        %719 = vmatpush.bf16.msra.mxu0 %v702
        %720 = vmatpush.bf16.msra.mxu0 %v700
        %721 = vmatpush.bf16.msra.mxu0 %v698
        %722 = vmatpush.bf16.msra.mxu0 %v696
        %723 = vmatmul.bf16.gmra.mxu0 %v713
        %v724 = vpop.f32.mrf.mxu0
        %v725 = vadd.f32 0.0, %v724
        %v726 = vpop.f32.mrf.mxu0
        %727 = vdwg.mxu0
        %728 = vmatpush.bf16.msra.mxu0 0
        %729 = vmatpush.bf16.msra.mxu0 0
        %730 = vmatpush.bf16.msra.mxu0 0
        %731 = vmatpush.bf16.msra.mxu0 0
        %732 = vmatpush.bf16.msra.mxu0 %v703
        %733 = vmatpush.bf16.msra.mxu0 %v701
        %734 = vmatpush.bf16.msra.mxu0 %v699
        %735 = vmatpush.bf16.msra.mxu0 %v697
        %736 = vmatmul.bf16.gmra.mxu0 %v713
        %v737 = vpop.f32.mrf.mxu0
        %v738 = vadd.f32 0.0, %v737
        %v739 = vpop.f32.mrf.mxu0
        %740 = vdwg.mxu0
        %v741 = vadd.f32 %v658, %v725
        %v742 = vadd.f32 %v659, %v738
        %v743 = vunpack.c.l.bf16 %v662
        %v744 = vsub.f32 %v661, %v743
        %v745 = vpack.c.bf16 %v744, %v744
        %v747 = vsel %vm265, %v745, 0
        %749 = vmatpush.bf16.msra.mxu0 0
        %750 = vmatpush.bf16.msra.mxu0 0
        %751 = vmatpush.bf16.msra.mxu0 0
        %752 = vmatpush.bf16.msra.mxu0 0
        %753 = vmatpush.bf16.msra.mxu0 %v702
        %754 = vmatpush.bf16.msra.mxu0 %v700
        %755 = vmatpush.bf16.msra.mxu0 %v698
        %756 = vmatpush.bf16.msra.mxu0 %v696
        %757 = vmatmul.bf16.gmra.mxu0 %v747
        %v758 = vpop.f32.mrf.mxu0
        %v759 = vadd.f32 0.0, %v758
        %v760 = vpop.f32.mrf.mxu0
        %761 = vdwg.mxu0
        %762 = vmatpush.bf16.msra.mxu0 0
        %763 = vmatpush.bf16.msra.mxu0 0
        %764 = vmatpush.bf16.msra.mxu0 0
        %765 = vmatpush.bf16.msra.mxu0 0
        %766 = vmatpush.bf16.msra.mxu0 %v703
        %767 = vmatpush.bf16.msra.mxu0 %v701
        %768 = vmatpush.bf16.msra.mxu0 %v699
        %769 = vmatpush.bf16.msra.mxu0 %v697
        %770 = vmatmul.bf16.gmra.mxu0 %v747
        %v771 = vpop.f32.mrf.mxu0
        %v772 = vadd.f32 0.0, %v771
        %v773 = vpop.f32.mrf.mxu0
        %774 = vdwg.mxu0
        %v775 = vadd.f32 %v741, %v759
        %v776 = vadd.f32 %v742, %v772
        %v777 = vunpack.c.l.bf16 %v745
        %v778 = vsub.f32 %v744, %v777
        %v779 = vpack.c.bf16 %v778, %v778
        %v781 = vsel %vm265, %v779, 0
        %783 = vmatpush.bf16.msra.mxu0 0
        %784 = vmatpush.bf16.msra.mxu0 0
        %785 = vmatpush.bf16.msra.mxu0 0
        %786 = vmatpush.bf16.msra.mxu0 0
        %787 = vmatpush.bf16.msra.mxu0 %v702
        %788 = vmatpush.bf16.msra.mxu0 %v700
        %789 = vmatpush.bf16.msra.mxu0 %v698
        %790 = vmatpush.bf16.msra.mxu0 %v696
        %791 = vmatmul.bf16.gmra.mxu0 %v781
        %v792 = vpop.f32.mrf.mxu0
        %v793 = vadd.f32 0.0, %v792
        %v794 = vpop.f32.mrf.mxu0
        %795 = vdwg.mxu0
        %796 = vmatpush.bf16.msra.mxu0 0
        %797 = vmatpush.bf16.msra.mxu0 0
        %798 = vmatpush.bf16.msra.mxu0 0
        %799 = vmatpush.bf16.msra.mxu0 0
        %800 = vmatpush.bf16.msra.mxu0 %v703
        %801 = vmatpush.bf16.msra.mxu0 %v701
        %802 = vmatpush.bf16.msra.mxu0 %v699
        %803 = vmatpush.bf16.msra.mxu0 %v697
        %804 = vmatmul.bf16.gmra.mxu0 %v781
        %v805 = vpop.f32.mrf.mxu0
        %v806 = vadd.f32 0.0, %v805
        %v807 = vpop.f32.mrf.mxu0
        %808 = vdwg.mxu0
        %v809 = vadd.f32 %v775, %v793
        %v810 = vadd.f32 %v776, %v806
        %v813 = vrot.slane %v810, 4
        %vm814 = vcmask 1043456
        %v815 = vsel %vm814, %v809, %v813
        %817 = vst [vmem:[%s210] sm:$0xff] %v815
        %s818 = scalar_lea.vmem %s189, 16 [#allocation5]
        %v819 = vld [vmem:[%s818] sm:$0xf]
        %v820 = vpack.c.bf16 %v819, %v819
        %v821 = vld [vmem:[#allocation2] sm:$0xff]
        %v822 = vld [vmem:[#allocation2 + $0x8] sm:$0xff]
        %v823 = vld [vmem:[#allocation2 + $0x10] sm:$0xff]
        %v824 = vld [vmem:[#allocation2 + $0x18] sm:$0xff]
        %v825 = vld [vmem:[#allocation2 + $0x20] sm:$0xff]
        %v826 = vld [vmem:[#allocation2 + $0x28] sm:$0xff]
        %v827 = vld [vmem:[#allocation2 + $0x30] sm:$0xff]
        %v828 = vld [vmem:[#allocation2 + $0x38] sm:$0xff]
        %v829 = vunpack.c.l.bf16 %v820
        %v830 = vsub.f32 %v819, %v829
        %v831 = vpack.c.bf16 %v830, %v830
        %v840 = vunpack.c.l.b16 %v821
        %v841 = vunpack.c.h.b16 %v821
        %v842 = vunpack.c.l.b16 %v822
        %v843 = vunpack.c.h.b16 %v822
        %v844 = vunpack.c.l.b16 %v823
        %v845 = vunpack.c.h.b16 %v823
        %v846 = vunpack.c.l.b16 %v824
        %v847 = vunpack.c.h.b16 %v824
        %v848 = vunpack.c.l.b16 %v825
        %v849 = vunpack.c.h.b16 %v825
        %v850 = vunpack.c.l.b16 %v826
        %v851 = vunpack.c.h.b16 %v826
        %v852 = vunpack.c.l.b16 %v827
        %v853 = vunpack.c.h.b16 %v827
        %v854 = vunpack.c.l.b16 %v828
        %v855 = vunpack.c.h.b16 %v828
        %v856 = vpack.c.b16 %v842, %v840
        %v857 = vpack.c.b16 %v843, %v841
        %v858 = vpack.c.b16 %v846, %v844
        %v859 = vpack.c.b16 %v847, %v845
        %v860 = vpack.c.b16 %v850, %v848
        %v861 = vpack.c.b16 %v851, %v849
        %v862 = vpack.c.b16 %v854, %v852
        %v863 = vpack.c.b16 %v855, %v853
        %v873 = vsel %vm265, %v831, 0
        %875 = vmatpush.bf16.msra.mxu0 0
        %876 = vmatpush.bf16.msra.mxu0 0
        %877 = vmatpush.bf16.msra.mxu0 0
        %878 = vmatpush.bf16.msra.mxu0 0
        %879 = vmatpush.bf16.msra.mxu0 %v862
        %880 = vmatpush.bf16.msra.mxu0 %v860
        %881 = vmatpush.bf16.msra.mxu0 %v858
        %882 = vmatpush.bf16.msra.mxu0 %v856
        %883 = vmatmul.bf16.gmra.mxu0 %v873
        %v884 = vpop.f32.mrf.mxu0
        %v885 = vadd.f32 0.0, %v884
        %v886 = vpop.f32.mrf.mxu0
        %887 = vdwg.mxu0
        %888 = vmatpush.bf16.msra.mxu0 0
        %889 = vmatpush.bf16.msra.mxu0 0
        %890 = vmatpush.bf16.msra.mxu0 0
        %891 = vmatpush.bf16.msra.mxu0 0
        %892 = vmatpush.bf16.msra.mxu0 %v863
        %893 = vmatpush.bf16.msra.mxu0 %v861
        %894 = vmatpush.bf16.msra.mxu0 %v859
        %895 = vmatpush.bf16.msra.mxu0 %v857
        %896 = vmatmul.bf16.gmra.mxu0 %v873
        %v897 = vpop.f32.mrf.mxu0
        %v898 = vadd.f32 0.0, %v897
        %v899 = vpop.f32.mrf.mxu0
        %900 = vdwg.mxu0
        %v902 = vsel %vm265, %v820, 0
        %904 = vmatpush.bf16.msra.mxu0 0
        %905 = vmatpush.bf16.msra.mxu0 0
        %906 = vmatpush.bf16.msra.mxu0 0
        %907 = vmatpush.bf16.msra.mxu0 0
        %908 = vmatpush.bf16.msra.mxu0 %v862
        %909 = vmatpush.bf16.msra.mxu0 %v860
        %910 = vmatpush.bf16.msra.mxu0 %v858
        %911 = vmatpush.bf16.msra.mxu0 %v856
        %912 = vmatmul.bf16.gmra.mxu0 %v902
        %v913 = vpop.f32.mrf.mxu0
        %v914 = vadd.f32 %v885, %v913
        %v915 = vpop.f32.mrf.mxu0
        %916 = vdwg.mxu0
        %917 = vmatpush.bf16.msra.mxu0 0
        %918 = vmatpush.bf16.msra.mxu0 0
        %919 = vmatpush.bf16.msra.mxu0 0
        %920 = vmatpush.bf16.msra.mxu0 0
        %921 = vmatpush.bf16.msra.mxu0 %v863
        %922 = vmatpush.bf16.msra.mxu0 %v861
        %923 = vmatpush.bf16.msra.mxu0 %v859
        %924 = vmatpush.bf16.msra.mxu0 %v857
        %925 = vmatmul.bf16.gmra.mxu0 %v902
        %v926 = vpop.f32.mrf.mxu0
        %v927 = vadd.f32 %v898, %v926
        %v928 = vpop.f32.mrf.mxu0
        %929 = vdwg.mxu0
        %v930 = vunpack.c.l.bf16 %v831
        %v931 = vsub.f32 %v830, %v930
        %v932 = vpack.c.bf16 %v931, %v931
        %v934 = vsel %vm265, %v932, 0
        %936 = vmatpush.bf16.msra.mxu0 0
        %937 = vmatpush.bf16.msra.mxu0 0
        %938 = vmatpush.bf16.msra.mxu0 0
        %939 = vmatpush.bf16.msra.mxu0 0
        %940 = vmatpush.bf16.msra.mxu0 %v862
        %941 = vmatpush.bf16.msra.mxu0 %v860
        %942 = vmatpush.bf16.msra.mxu0 %v858
        %943 = vmatpush.bf16.msra.mxu0 %v856
        %944 = vmatmul.bf16.gmra.mxu0 %v934
        %v945 = vpop.f32.mrf.mxu0
        %v946 = vadd.f32 0.0, %v945
        %v947 = vpop.f32.mrf.mxu0
        %948 = vdwg.mxu0
        %949 = vmatpush.bf16.msra.mxu0 0
        %950 = vmatpush.bf16.msra.mxu0 0
        %951 = vmatpush.bf16.msra.mxu0 0
        %952 = vmatpush.bf16.msra.mxu0 0
        %953 = vmatpush.bf16.msra.mxu0 %v863
        %954 = vmatpush.bf16.msra.mxu0 %v861
        %955 = vmatpush.bf16.msra.mxu0 %v859
        %956 = vmatpush.bf16.msra.mxu0 %v857
        %957 = vmatmul.bf16.gmra.mxu0 %v934
        %v958 = vpop.f32.mrf.mxu0
        %v959 = vadd.f32 0.0, %v958
        %v960 = vpop.f32.mrf.mxu0
        %961 = vdwg.mxu0
        %v962 = vadd.f32 %v914, %v946
        %v963 = vadd.f32 %v927, %v959
        %s964 = scalar_lea.vmem %s189, 20 [#allocation5]
        %v965 = vld [vmem:[%s964] sm:$0xf]
        %v966 = vpack.c.bf16 %v965, %v965
        %v967 = vld [vmem:[%s361] sm:$0xff]
        %v968 = vld [vmem:[%s361 + $0x8] sm:$0xff]
        %v969 = vld [vmem:[%s361 + $0x10] sm:$0xff]
        %v970 = vld [vmem:[%s361 + $0x18] sm:$0xff]
        %v971 = vld [vmem:[%s361 + $0x20] sm:$0xff]
        %v972 = vld [vmem:[%s361 + $0x28] sm:$0xff]
        %v973 = vld [vmem:[%s361 + $0x30] sm:$0xff]
        %v974 = vld [vmem:[%s361 + $0x38] sm:$0xff]
        %v983 = vunpack.c.l.b16 %v967
        %v984 = vunpack.c.h.b16 %v967
        %v985 = vunpack.c.l.b16 %v968
        %v986 = vunpack.c.h.b16 %v968
        %v987 = vunpack.c.l.b16 %v969
        %v988 = vunpack.c.h.b16 %v969
        %v989 = vunpack.c.l.b16 %v970
        %v990 = vunpack.c.h.b16 %v970
        %v991 = vunpack.c.l.b16 %v971
        %v992 = vunpack.c.h.b16 %v971
        %v993 = vunpack.c.l.b16 %v972
        %v994 = vunpack.c.h.b16 %v972
        %v995 = vunpack.c.l.b16 %v973
        %v996 = vunpack.c.h.b16 %v973
        %v997 = vunpack.c.l.b16 %v974
        %v998 = vunpack.c.h.b16 %v974
        %v999 = vpack.c.b16 %v985, %v983
        %v1000 = vpack.c.b16 %v986, %v984
        %v1001 = vpack.c.b16 %v989, %v987
        %v1002 = vpack.c.b16 %v990, %v988
        %v1003 = vpack.c.b16 %v993, %v991
        %v1004 = vpack.c.b16 %v994, %v992
        %v1005 = vpack.c.b16 %v997, %v995
        %v1006 = vpack.c.b16 %v998, %v996
        %v1016 = vsel %vm265, %v966, 0
        %1018 = vmatpush.bf16.msra.mxu0 0
        %1019 = vmatpush.bf16.msra.mxu0 0
        %1020 = vmatpush.bf16.msra.mxu0 0
        %1021 = vmatpush.bf16.msra.mxu0 0
        %1022 = vmatpush.bf16.msra.mxu0 %v1005
        %1023 = vmatpush.bf16.msra.mxu0 %v1003
        %1024 = vmatpush.bf16.msra.mxu0 %v1001
        %1025 = vmatpush.bf16.msra.mxu0 %v999
        %1026 = vmatmul.bf16.gmra.mxu0 %v1016
        %v1027 = vpop.f32.mrf.mxu0
        %v1028 = vadd.f32 0.0, %v1027
        %v1029 = vpop.f32.mrf.mxu0
        %1030 = vdwg.mxu0
        %1031 = vmatpush.bf16.msra.mxu0 0
        %1032 = vmatpush.bf16.msra.mxu0 0
        %1033 = vmatpush.bf16.msra.mxu0 0
        %1034 = vmatpush.bf16.msra.mxu0 0
        %1035 = vmatpush.bf16.msra.mxu0 %v1006
        %1036 = vmatpush.bf16.msra.mxu0 %v1004
        %1037 = vmatpush.bf16.msra.mxu0 %v1002
        %1038 = vmatpush.bf16.msra.mxu0 %v1000
        %1039 = vmatmul.bf16.gmra.mxu0 %v1016
        %v1040 = vpop.f32.mrf.mxu0
        %v1041 = vadd.f32 0.0, %v1040
        %v1042 = vpop.f32.mrf.mxu0
        %1043 = vdwg.mxu0
        %v1044 = vadd.f32 %v962, %v1028
        %v1045 = vadd.f32 %v963, %v1041
        %v1046 = vunpack.c.l.bf16 %v966
        %v1047 = vsub.f32 %v965, %v1046
        %v1048 = vpack.c.bf16 %v1047, %v1047
        %v1050 = vsel %vm265, %v1048, 0
        %1052 = vmatpush.bf16.msra.mxu0 0
        %1053 = vmatpush.bf16.msra.mxu0 0
        %1054 = vmatpush.bf16.msra.mxu0 0
        %1055 = vmatpush.bf16.msra.mxu0 0
        %1056 = vmatpush.bf16.msra.mxu0 %v1005
        %1057 = vmatpush.bf16.msra.mxu0 %v1003
        %1058 = vmatpush.bf16.msra.mxu0 %v1001
        %1059 = vmatpush.bf16.msra.mxu0 %v999
        %1060 = vmatmul.bf16.gmra.mxu0 %v1050
        %v1061 = vpop.f32.mrf.mxu0
        %v1062 = vadd.f32 0.0, %v1061
        %v1063 = vpop.f32.mrf.mxu0
        %1064 = vdwg.mxu0
        %1065 = vmatpush.bf16.msra.mxu0 0
        %1066 = vmatpush.bf16.msra.mxu0 0
        %1067 = vmatpush.bf16.msra.mxu0 0
        %1068 = vmatpush.bf16.msra.mxu0 0
        %1069 = vmatpush.bf16.msra.mxu0 %v1006
        %1070 = vmatpush.bf16.msra.mxu0 %v1004
        %1071 = vmatpush.bf16.msra.mxu0 %v1002
        %1072 = vmatpush.bf16.msra.mxu0 %v1000
        %1073 = vmatmul.bf16.gmra.mxu0 %v1050
        %v1074 = vpop.f32.mrf.mxu0
        %v1075 = vadd.f32 0.0, %v1074
        %v1076 = vpop.f32.mrf.mxu0
        %1077 = vdwg.mxu0
        %v1078 = vadd.f32 %v1044, %v1062
        %v1079 = vadd.f32 %v1045, %v1075
        %v1080 = vunpack.c.l.bf16 %v1048
        %v1081 = vsub.f32 %v1047, %v1080
        %v1082 = vpack.c.bf16 %v1081, %v1081
        %v1084 = vsel %vm265, %v1082, 0
        %1086 = vmatpush.bf16.msra.mxu0 0
        %1087 = vmatpush.bf16.msra.mxu0 0
        %1088 = vmatpush.bf16.msra.mxu0 0
        %1089 = vmatpush.bf16.msra.mxu0 0
        %1090 = vmatpush.bf16.msra.mxu0 %v1005
        %1091 = vmatpush.bf16.msra.mxu0 %v1003
        %1092 = vmatpush.bf16.msra.mxu0 %v1001
        %1093 = vmatpush.bf16.msra.mxu0 %v999
        %1094 = vmatmul.bf16.gmra.mxu0 %v1084
        %v1095 = vpop.f32.mrf.mxu0
        %v1096 = vadd.f32 0.0, %v1095
        %v1097 = vpop.f32.mrf.mxu0
        %1098 = vdwg.mxu0
        %1099 = vmatpush.bf16.msra.mxu0 0
        %1100 = vmatpush.bf16.msra.mxu0 0
        %1101 = vmatpush.bf16.msra.mxu0 0
        %1102 = vmatpush.bf16.msra.mxu0 0
        %1103 = vmatpush.bf16.msra.mxu0 %v1006
        %1104 = vmatpush.bf16.msra.mxu0 %v1004
        %1105 = vmatpush.bf16.msra.mxu0 %v1002
        %1106 = vmatpush.bf16.msra.mxu0 %v1000
        %1107 = vmatmul.bf16.gmra.mxu0 %v1084
        %v1108 = vpop.f32.mrf.mxu0
        %v1109 = vadd.f32 0.0, %v1108
        %v1110 = vpop.f32.mrf.mxu0
        %1111 = vdwg.mxu0
        %v1112 = vadd.f32 %v1078, %v1096
        %v1113 = vadd.f32 %v1079, %v1109
        %s1114 = scalar_lea.vmem %s189, 24 [#allocation5]
        %v1115 = vld [vmem:[%s1114] sm:$0xf]
        %v1116 = vpack.c.bf16 %v1115, %v1115
        %v1117 = vld [vmem:[%s512] sm:$0xff]
        %v1118 = vld [vmem:[%s512 + $0x8] sm:$0xff]
        %v1119 = vld [vmem:[%s512 + $0x10] sm:$0xff]
        %v1120 = vld [vmem:[%s512 + $0x18] sm:$0xff]
        %v1121 = vld [vmem:[%s512 + $0x20] sm:$0xff]
        %v1122 = vld [vmem:[%s512 + $0x28] sm:$0xff]
        %v1123 = vld [vmem:[%s512 + $0x30] sm:$0xff]
        %v1124 = vld [vmem:[%s512 + $0x38] sm:$0xff]
        %v1133 = vunpack.c.l.b16 %v1117
        %v1134 = vunpack.c.h.b16 %v1117
        %v1135 = vunpack.c.l.b16 %v1118
        %v1136 = vunpack.c.h.b16 %v1118
        %v1137 = vunpack.c.l.b16 %v1119
        %v1138 = vunpack.c.h.b16 %v1119
        %v1139 = vunpack.c.l.b16 %v1120
        %v1140 = vunpack.c.h.b16 %v1120
        %v1141 = vunpack.c.l.b16 %v1121
        %v1142 = vunpack.c.h.b16 %v1121
        %v1143 = vunpack.c.l.b16 %v1122
        %v1144 = vunpack.c.h.b16 %v1122
        %v1145 = vunpack.c.l.b16 %v1123
        %v1146 = vunpack.c.h.b16 %v1123
        %v1147 = vunpack.c.l.b16 %v1124
        %v1148 = vunpack.c.h.b16 %v1124
        %v1149 = vpack.c.b16 %v1135, %v1133
        %v1150 = vpack.c.b16 %v1136, %v1134
        %v1151 = vpack.c.b16 %v1139, %v1137
        %v1152 = vpack.c.b16 %v1140, %v1138
        %v1153 = vpack.c.b16 %v1143, %v1141
        %v1154 = vpack.c.b16 %v1144, %v1142
        %v1155 = vpack.c.b16 %v1147, %v1145
        %v1156 = vpack.c.b16 %v1148, %v1146
        %v1166 = vsel %vm265, %v1116, 0
        %1168 = vmatpush.bf16.msra.mxu0 0
        %1169 = vmatpush.bf16.msra.mxu0 0
        %1170 = vmatpush.bf16.msra.mxu0 0
        %1171 = vmatpush.bf16.msra.mxu0 0
        %1172 = vmatpush.bf16.msra.mxu0 %v1155
        %1173 = vmatpush.bf16.msra.mxu0 %v1153
        %1174 = vmatpush.bf16.msra.mxu0 %v1151
        %1175 = vmatpush.bf16.msra.mxu0 %v1149
        %1176 = vmatmul.bf16.gmra.mxu0 %v1166
        %v1177 = vpop.f32.mrf.mxu0
        %v1178 = vadd.f32 0.0, %v1177
        %v1179 = vpop.f32.mrf.mxu0
        %1180 = vdwg.mxu0
        %1181 = vmatpush.bf16.msra.mxu0 0
        %1182 = vmatpush.bf16.msra.mxu0 0
        %1183 = vmatpush.bf16.msra.mxu0 0
        %1184 = vmatpush.bf16.msra.mxu0 0
        %1185 = vmatpush.bf16.msra.mxu0 %v1156
        %1186 = vmatpush.bf16.msra.mxu0 %v1154
        %1187 = vmatpush.bf16.msra.mxu0 %v1152
        %1188 = vmatpush.bf16.msra.mxu0 %v1150
        %1189 = vmatmul.bf16.gmra.mxu0 %v1166
        %v1190 = vpop.f32.mrf.mxu0
        %v1191 = vadd.f32 0.0, %v1190
        %v1192 = vpop.f32.mrf.mxu0
        %1193 = vdwg.mxu0
        %v1194 = vadd.f32 %v1112, %v1178
        %v1195 = vadd.f32 %v1113, %v1191
        %v1196 = vunpack.c.l.bf16 %v1116
        %v1197 = vsub.f32 %v1115, %v1196
        %v1198 = vpack.c.bf16 %v1197, %v1197
        %v1200 = vsel %vm265, %v1198, 0
        %1202 = vmatpush.bf16.msra.mxu0 0
        %1203 = vmatpush.bf16.msra.mxu0 0
        %1204 = vmatpush.bf16.msra.mxu0 0
        %1205 = vmatpush.bf16.msra.mxu0 0
        %1206 = vmatpush.bf16.msra.mxu0 %v1155
        %1207 = vmatpush.bf16.msra.mxu0 %v1153
        %1208 = vmatpush.bf16.msra.mxu0 %v1151
        %1209 = vmatpush.bf16.msra.mxu0 %v1149
        %1210 = vmatmul.bf16.gmra.mxu0 %v1200
        %v1211 = vpop.f32.mrf.mxu0
        %v1212 = vadd.f32 0.0, %v1211
        %v1213 = vpop.f32.mrf.mxu0
        %1214 = vdwg.mxu0
        %1215 = vmatpush.bf16.msra.mxu0 0
        %1216 = vmatpush.bf16.msra.mxu0 0
        %1217 = vmatpush.bf16.msra.mxu0 0
        %1218 = vmatpush.bf16.msra.mxu0 0
        %1219 = vmatpush.bf16.msra.mxu0 %v1156
        %1220 = vmatpush.bf16.msra.mxu0 %v1154
        %1221 = vmatpush.bf16.msra.mxu0 %v1152
        %1222 = vmatpush.bf16.msra.mxu0 %v1150
        %1223 = vmatmul.bf16.gmra.mxu0 %v1200
        %v1224 = vpop.f32.mrf.mxu0
        %v1225 = vadd.f32 0.0, %v1224
        %v1226 = vpop.f32.mrf.mxu0
        %1227 = vdwg.mxu0
        %v1228 = vadd.f32 %v1194, %v1212
        %v1229 = vadd.f32 %v1195, %v1225
        %v1230 = vunpack.c.l.bf16 %v1198
        %v1231 = vsub.f32 %v1197, %v1230
        %v1232 = vpack.c.bf16 %v1231, %v1231
        %v1234 = vsel %vm265, %v1232, 0
        %1236 = vmatpush.bf16.msra.mxu0 0
        %1237 = vmatpush.bf16.msra.mxu0 0
        %1238 = vmatpush.bf16.msra.mxu0 0
        %1239 = vmatpush.bf16.msra.mxu0 0
        %1240 = vmatpush.bf16.msra.mxu0 %v1155
        %1241 = vmatpush.bf16.msra.mxu0 %v1153
        %1242 = vmatpush.bf16.msra.mxu0 %v1151
        %1243 = vmatpush.bf16.msra.mxu0 %v1149
        %1244 = vmatmul.bf16.gmra.mxu0 %v1234
        %v1245 = vpop.f32.mrf.mxu0
        %v1246 = vadd.f32 0.0, %v1245
        %v1247 = vpop.f32.mrf.mxu0
        %1248 = vdwg.mxu0
        %1249 = vmatpush.bf16.msra.mxu0 0
        %1250 = vmatpush.bf16.msra.mxu0 0
        %1251 = vmatpush.bf16.msra.mxu0 0
        %1252 = vmatpush.bf16.msra.mxu0 0
        %1253 = vmatpush.bf16.msra.mxu0 %v1156
        %1254 = vmatpush.bf16.msra.mxu0 %v1154
        %1255 = vmatpush.bf16.msra.mxu0 %v1152
        %1256 = vmatpush.bf16.msra.mxu0 %v1150
        %1257 = vmatmul.bf16.gmra.mxu0 %v1234
        %v1258 = vpop.f32.mrf.mxu0
        %v1259 = vadd.f32 0.0, %v1258
        %v1260 = vpop.f32.mrf.mxu0
        %1261 = vdwg.mxu0
        %v1262 = vadd.f32 %v1228, %v1246
        %v1263 = vadd.f32 %v1229, %v1259
        %s1264 = scalar_lea.vmem %s189, 28 [#allocation5]
        %v1265 = vld [vmem:[%s1264] sm:$0xf]
        %v1266 = vpack.c.bf16 %v1265, %v1265
        %v1267 = vld [vmem:[%s663] sm:$0xff]
        %v1268 = vld [vmem:[%s663 + $0x8] sm:$0xff]
        %v1269 = vld [vmem:[%s663 + $0x10] sm:$0xff]
        %v1270 = vld [vmem:[%s663 + $0x18] sm:$0xff]
        %v1271 = vld [vmem:[%s663 + $0x20] sm:$0xff]
        %v1272 = vld [vmem:[%s663 + $0x28] sm:$0xff]
        %v1273 = vld [vmem:[%s663 + $0x30] sm:$0xff]
        %v1274 = vld [vmem:[%s663 + $0x38] sm:$0xff]
        %v1283 = vunpack.c.l.b16 %v1267
        %v1284 = vunpack.c.h.b16 %v1267
        %v1285 = vunpack.c.l.b16 %v1268
        %v1286 = vunpack.c.h.b16 %v1268
        %v1287 = vunpack.c.l.b16 %v1269
        %v1288 = vunpack.c.h.b16 %v1269
        %v1289 = vunpack.c.l.b16 %v1270
        %v1290 = vunpack.c.h.b16 %v1270
        %v1291 = vunpack.c.l.b16 %v1271
        %v1292 = vunpack.c.h.b16 %v1271
        %v1293 = vunpack.c.l.b16 %v1272
        %v1294 = vunpack.c.h.b16 %v1272
        %v1295 = vunpack.c.l.b16 %v1273
        %v1296 = vunpack.c.h.b16 %v1273
        %v1297 = vunpack.c.l.b16 %v1274
        %v1298 = vunpack.c.h.b16 %v1274
        %v1299 = vpack.c.b16 %v1285, %v1283
        %v1300 = vpack.c.b16 %v1286, %v1284
        %v1301 = vpack.c.b16 %v1289, %v1287
        %v1302 = vpack.c.b16 %v1290, %v1288
        %v1303 = vpack.c.b16 %v1293, %v1291
        %v1304 = vpack.c.b16 %v1294, %v1292
        %v1305 = vpack.c.b16 %v1297, %v1295
        %v1306 = vpack.c.b16 %v1298, %v1296
        %v1316 = vsel %vm265, %v1266, 0
        %1318 = vmatpush.bf16.msra.mxu0 0
        %1319 = vmatpush.bf16.msra.mxu0 0
        %1320 = vmatpush.bf16.msra.mxu0 0
        %1321 = vmatpush.bf16.msra.mxu0 0
        %1322 = vmatpush.bf16.msra.mxu0 %v1305
        %1323 = vmatpush.bf16.msra.mxu0 %v1303
        %1324 = vmatpush.bf16.msra.mxu0 %v1301
        %1325 = vmatpush.bf16.msra.mxu0 %v1299
        %1326 = vmatmul.bf16.gmra.mxu0 %v1316
        %v1327 = vpop.f32.mrf.mxu0
        %v1328 = vadd.f32 0.0, %v1327
        %v1329 = vpop.f32.mrf.mxu0
        %1330 = vdwg.mxu0
        %1331 = vmatpush.bf16.msra.mxu0 0
        %1332 = vmatpush.bf16.msra.mxu0 0
        %1333 = vmatpush.bf16.msra.mxu0 0
        %1334 = vmatpush.bf16.msra.mxu0 0
        %1335 = vmatpush.bf16.msra.mxu0 %v1306
        %1336 = vmatpush.bf16.msra.mxu0 %v1304
        %1337 = vmatpush.bf16.msra.mxu0 %v1302
        %1338 = vmatpush.bf16.msra.mxu0 %v1300
        %1339 = vmatmul.bf16.gmra.mxu0 %v1316
        %v1340 = vpop.f32.mrf.mxu0
        %v1341 = vadd.f32 0.0, %v1340
        %v1342 = vpop.f32.mrf.mxu0
        %1343 = vdwg.mxu0
        %v1344 = vadd.f32 %v1262, %v1328
        %v1345 = vadd.f32 %v1263, %v1341
        %v1346 = vunpack.c.l.bf16 %v1266
        %v1347 = vsub.f32 %v1265, %v1346
        %v1348 = vpack.c.bf16 %v1347, %v1347
        %v1350 = vsel %vm265, %v1348, 0
        %1352 = vmatpush.bf16.msra.mxu0 0
        %1353 = vmatpush.bf16.msra.mxu0 0
        %1354 = vmatpush.bf16.msra.mxu0 0
        %1355 = vmatpush.bf16.msra.mxu0 0
        %1356 = vmatpush.bf16.msra.mxu0 %v1305
        %1357 = vmatpush.bf16.msra.mxu0 %v1303
        %1358 = vmatpush.bf16.msra.mxu0 %v1301
        %1359 = vmatpush.bf16.msra.mxu0 %v1299
        %1360 = vmatmul.bf16.gmra.mxu0 %v1350
        %v1361 = vpop.f32.mrf.mxu0
        %v1362 = vadd.f32 0.0, %v1361
        %v1363 = vpop.f32.mrf.mxu0
        %1364 = vdwg.mxu0
        %1365 = vmatpush.bf16.msra.mxu0 0
        %1366 = vmatpush.bf16.msra.mxu0 0
        %1367 = vmatpush.bf16.msra.mxu0 0
        %1368 = vmatpush.bf16.msra.mxu0 0
        %1369 = vmatpush.bf16.msra.mxu0 %v1306
        %1370 = vmatpush.bf16.msra.mxu0 %v1304
        %1371 = vmatpush.bf16.msra.mxu0 %v1302
        %1372 = vmatpush.bf16.msra.mxu0 %v1300
        %1373 = vmatmul.bf16.gmra.mxu0 %v1350
        %v1374 = vpop.f32.mrf.mxu0
        %v1375 = vadd.f32 0.0, %v1374
        %v1376 = vpop.f32.mrf.mxu0
        %1377 = vdwg.mxu0
        %v1378 = vadd.f32 %v1344, %v1362
        %v1379 = vadd.f32 %v1345, %v1375
        %v1380 = vunpack.c.l.bf16 %v1348
        %v1381 = vsub.f32 %v1347, %v1380
        %v1382 = vpack.c.bf16 %v1381, %v1381
        %v1384 = vsel %vm265, %v1382, 0
        %1386 = vmatpush.bf16.msra.mxu0 0
        %1387 = vmatpush.bf16.msra.mxu0 0
        %1388 = vmatpush.bf16.msra.mxu0 0
        %1389 = vmatpush.bf16.msra.mxu0 0
        %1390 = vmatpush.bf16.msra.mxu0 %v1305
        %1391 = vmatpush.bf16.msra.mxu0 %v1303
        %1392 = vmatpush.bf16.msra.mxu0 %v1301
        %1393 = vmatpush.bf16.msra.mxu0 %v1299
        %1394 = vmatmul.bf16.gmra.mxu0 %v1384
        %v1395 = vpop.f32.mrf.mxu0
        %v1396 = vadd.f32 0.0, %v1395
        %v1397 = vpop.f32.mrf.mxu0
        %1398 = vdwg.mxu0
        %1399 = vmatpush.bf16.msra.mxu0 0
        %1400 = vmatpush.bf16.msra.mxu0 0
        %1401 = vmatpush.bf16.msra.mxu0 0
        %1402 = vmatpush.bf16.msra.mxu0 0
        %1403 = vmatpush.bf16.msra.mxu0 %v1306
        %1404 = vmatpush.bf16.msra.mxu0 %v1304
        %1405 = vmatpush.bf16.msra.mxu0 %v1302
        %1406 = vmatpush.bf16.msra.mxu0 %v1300
        %1407 = vmatmul.bf16.gmra.mxu0 %v1384
        %v1408 = vpop.f32.mrf.mxu0
        %v1409 = vadd.f32 0.0, %v1408
        %v1410 = vpop.f32.mrf.mxu0
        %1411 = vdwg.mxu0
        %v1412 = vadd.f32 %v1378, %v1396
        %v1413 = vadd.f32 %v1379, %v1409
        %v1416 = vrot.slane %v1413, 4
        %v1417 = vsel %vm814, %v1412, %v1416
        %1419 = vst [vmem:[%s210 + $0x8] sm:$0xff] %v1417
        %s1420 = sand.u32 %s102, 1
        %s1421 = scalar_lea.sflag [#allocation4], %s1420
        %s1422 = sand.u32 %s102, 1
        %s1423 = smul.addr %s1422, 16
        %s1424 = scalar_lea.vmem [#allocation7], %s1423
        // Predicated region
        $region37: #{tpu_custom_call.1} parent=27 // pred_check
          %p1425 = pneg %p112
        $region38: #{tpu_custom_call.1} parent=27 // pred_check_branch
          %1427 = sbr.rel (%p1425) target = $region40
        $region39: #{tpu_custom_call.1} parent=27 // pred_region
          %1429 = vsyncadd %s1421, 0
          %s1430 = smul.addr %s27, 4
          %s1431 = smul.addr %s26, 4
          %s1432 = sadd.s32 %s1430, %s1431
          %s1433 = smul.addr %s25, 16
          %s1434 = sadd.s32 %s1432, %s1433
          %s1435 = smul.addr %s1434, 4
          %s1436 = scalar_lea.hbm %s2, %s1435
          %s1438 = sshll.u32 %s1424, 4
          %s1439 = int_to_ptr.vmem [resolvable:$true] %s1438
          %s1440 = sshll.u32 %s1436, 4
          %s1441 = int_to_ptr.hbm [resolvable:$true] %s1440
          %1443 = dma.vmem_to_hbm [thread:$0]  %s1439, 256, %s1441, %s1421
        $region40: #{tpu_custom_call.1} parent=27 // pred_fallthru
          _
      $region28: #{tpu_custom_call.1} parent=5 // pred_fallthru
        _
      %p1444 = scmp.le.s32.totalorder 2, %s15
      // Predicated region
      $region41: #{tpu_custom_call.1} parent=5 // pred_check
        %p1445 = pneg %p1444
      $region42: #{tpu_custom_call.1} parent=5 // pred_check_branch
        %1447 = sbr.rel (%p1445) target = $region44
      $region43: #{tpu_custom_call.1} parent=5 // pred_region
        %s1448 = ssub.s32 %s15, 2
        // Predicated region
        $region45: #{tpu_custom_call.1} parent=43 // pred_check
          %p1449 = pneg %p118
        $region46: #{tpu_custom_call.1} parent=43 // pred_check_branch
          %1451 = sbr.rel (%p1449) target = $region48
        $region47: #{tpu_custom_call.1} parent=43 // pred_region
          %s1452 = sand.u32 %s103, 1
          %s1453 = scalar_lea.sflag [#allocation4], %s1452
          %s1454 = sand.u32 %s103, 1
          %s1455 = smul.addr %s1454, 16
          %s1456 = scalar_lea.vmem [#allocation7], %s1455
          %1458 = dma.done %s1453, 256
        $region48: #{tpu_custom_call.1} parent=43 // pred_fallthru
          _
      $region44: #{tpu_custom_call.1} parent=5 // pred_fallthru
        _
    $region6: #{tpu_custom_call.1} parent=1 // loop_footer
      %s19 = sadd.s32 1, %s15
    $region7: #{tpu_custom_call.1} parent=1 // loop_footer_branch
      %14 = sbr.rel target = $region3
    $region8: #{tpu_custom_call.1} parent=1 // loop_exit
      _
    %1459 = vsyncpa [#allocation3], 1
    %s1460 = scalar_lea.sflag [#allocation3], 1
    %1461 = vsyncpa %s1460, 1
    %1462 = vsyncpa [#allocation6], 1
    %s1463 = scalar_lea.sflag [#allocation6], 1
    %1464 = vsyncpa %s1463, 1
    %1465 = vsyncpa [#allocation4], 1
    %s1466 = scalar_lea.sflag [#allocation4], 1
    %1467 = vsyncpa %s1466, 1

</llo_original>
